<compile_context>
chip_gen: v7x
topology: tpu7x:2x2x1
jax: 0.10.0
libtpu: 0.0.40
codegen_flags: <defaults>
</compile_context>

<pallas_src>
import functools

import numpy as np
import jax
import jax.numpy as jnp
from jax.experimental import pallas as pl
from jax.experimental.pallas import tpu as pltpu


# ----------------------------------------------------------------------------
# Fused multi-head attention kernel (one grid step == one batch element)
# ----------------------------------------------------------------------------
def mha_kernel(q_ref, k_ref, v_ref, mask_ref,
               wq_ref, bq_ref, wk_ref, bk_ref, wv_ref, bv_ref, wo_ref, bo_ref,
               out_ref, *, n_heads, inv_scale, epsilon):
    """q_ref: (1, Sq, E); k_ref/v_ref: (1, Sk, E); mask_ref: (1, Sq, Sk) f32.

    Reproduces:
        Q = q Wq + bq ; K = k Wk + bk ; V = v Wv + bv        (nn.Linear)
        energy = Q K^T / sqrt(E)  (per head)
        energy[mask == 0] = -epsilon
        attn = softmax(energy, -1)
        out  = concat_heads(attn V) Wo + bo
    """
    q = q_ref[0]                      # (Sq, E)
    k = k_ref[0]                      # (Sk, E)
    v = v_ref[0]                      # (Sk, E)
    mask = mask_ref[0]                # (Sq, Sk) float32

    Sq, E = q.shape
    Sk = k.shape[0]
    hd = E // n_heads

    # --- QKV projections (whole batch element, batched over seq on the MXU) ---
    Q = jnp.dot(q, wq_ref[...], preferred_element_type=jnp.float32) + bq_ref[...]
    K = jnp.dot(k, wk_ref[...], preferred_element_type=jnp.float32) + bk_ref[...]
    V = jnp.dot(v, wv_ref[...], preferred_element_type=jnp.float32) + bv_ref[...]

    # --- split heads once: (S, E) -> (H, S, hd) ---
    Qh = Q.reshape(Sq, n_heads, hd).transpose(1, 0, 2)
    Kh = K.reshape(Sk, n_heads, hd).transpose(1, 0, 2)
    Vh = V.reshape(Sk, n_heads, hd).transpose(1, 0, 2)

    # --- scaled dot-product attention, batched over heads ---
    energy = jnp.einsum('hqd,hkd->hqk', Qh, Kh,
                        preferred_element_type=jnp.float32) * inv_scale
    # faithful to the reference: masked positions are filled with -epsilon
    energy = jnp.where(mask[None, :, :] == 0.0, -epsilon, energy)

    m = jnp.max(energy, axis=-1, keepdims=True)
    p = jnp.exp(energy - m)
    denom = jnp.sum(p, axis=-1, keepdims=True)
    attn = p * pl.reciprocal(denom, approx=True)          # EUP reciprocal

    weighted = jnp.einsum('hqk,hkd->hqd', attn, Vh,
                          preferred_element_type=jnp.float32)   # (H, Sq, hd)

    # --- merge heads and output projection ---
    wflat = weighted.transpose(1, 0, 2).reshape(Sq, E)          # (Sq, E)
    out = jnp.dot(wflat, wo_ref[...], preferred_element_type=jnp.float32) + bo_ref[...]

    out_ref[0] = out


# ----------------------------------------------------------------------------
# Wrapper: one pallas_call, grid over batch, everything else VMEM-resident
# ----------------------------------------------------------------------------
def multi_head_attention(q, k, v, mask, params, *, n_heads):
    B, Sq, E = q.shape
    Sk = k.shape[1]
    assert E % n_heads == 0

    kernel = functools.partial(
        mha_kernel,
        n_heads=n_heads,
        inv_scale=1.0 / (float(E) ** 0.5),
        epsilon=1e-10,
    )

    act_spec_q = pl.BlockSpec((1, Sq, E), lambda b: (b, 0, 0))
    act_spec_k = pl.BlockSpec((1, Sk, E), lambda b: (b, 0, 0))
    mask_spec = pl.BlockSpec((1, Sq, Sk), lambda b: (b, 0, 0))
    w_spec = pl.BlockSpec((E, E), lambda b: (0, 0))
    b_spec = pl.BlockSpec((1, E), lambda b: (0, 0))

    grid_spec = pltpu.PrefetchScalarGridSpec(
        num_scalar_prefetch=0,
        grid=(B,),
        in_specs=[act_spec_q, act_spec_k, act_spec_k, mask_spec,
                  w_spec, b_spec, w_spec, b_spec,
                  w_spec, b_spec, w_spec, b_spec],
        out_specs=pl.BlockSpec((1, Sq, E), lambda b: (b, 0, 0)),
    )

    return pl.pallas_call(
        kernel,
        out_shape=jax.ShapeDtypeStruct((B, Sq, E), jnp.float32),
        grid_spec=grid_spec,
        compiler_params=pltpu.CompilerParams(
            dimension_semantics=("parallel",)),   # v7x: shard batch over 2 TCs
    )(q, k, v, mask,
      params['wq'], params['bq'], params['wk'], params['bk'],
      params['wv'], params['bv'], params['wo'], params['bo'])


# ----------------------------------------------------------------------------
# Pure-JAX reference (mirrors the PyTorch module) for correctness checking
# ----------------------------------------------------------------------------
def mha_reference(q, k, v, mask, p, *, n_heads):
    B, Sq, E = q.shape
    hd = E // n_heads
    Q = q @ p['wq'] + p['bq']
    K = k @ p['wk'] + p['bk']
    V = v @ p['wv'] + p['bv']
    Qh = Q.reshape(B, Sq, n_heads, hd).transpose(0, 2, 1, 3)
    Kh = K.reshape(B, -1, n_heads, hd).transpose(0, 2, 1, 3)
    Vh = V.reshape(B, -1, n_heads, hd).transpose(0, 2, 1, 3)
    energy = jnp.einsum('bhqd,bhkd->bhqk', Qh, Kh) / (float(E) ** 0.5)
    energy = jnp.where(mask[:, None, :, :] == 0.0, -1e-10, energy)
    attn = jax.nn.softmax(energy, axis=-1)
    w = jnp.einsum('bhqk,bhkd->bhqd', attn, Vh)
    wflat = w.transpose(0, 2, 1, 3).reshape(B, Sq, E)
    return wflat @ p['wo'] + p['bo']


# ----------------------------------------------------------------------------
# Deterministic parameter init (matches torch.nn.Linear's uniform init)
# ----------------------------------------------------------------------------
def init_mha_params(key, embed_dim):
    def linear_init(k, fan_in, fan_out):
        k1, k2 = jax.random.split(k)
        bound = 1.0 / float(np.sqrt(fan_in))
        w = jax.random.uniform(k1, (fan_in, fan_out), jnp.float32, -bound, bound)
        b = jax.random.uniform(k2, (1, fan_out), jnp.float32, -bound, bound)
        return w, b

    kq, kk, kv, ko = jax.random.split(key, 4)
    wq, bq = linear_init(kq, embed_dim, embed_dim)
    wk, bk = linear_init(kk, embed_dim, embed_dim)
    wv, bv = linear_init(kv, embed_dim, embed_dim)
    wo, bo = linear_init(ko, embed_dim, embed_dim)
    return dict(wq=wq, bq=bq, wk=wk, bk=bk, wv=wv, bv=bv, wo=wo, bo=bo)


# ----------------------------------------------------------------------------
if __name__ == "__main__":
    # Small, lane/sublane-aligned shapes consistent with the module
    # (embed_dim multiple of n_heads; E on the 128-lane axis).
    B, SQ, SK = 4, 16, 16
    EMBED_DIM, N_HEADS = 128, 4

    key = jax.random.PRNGKey(0)
    kp, kx = jax.random.split(key)

    params = init_mha_params(kp, EMBED_DIM)
    x = jax.random.normal(kx, (B, SQ, EMBED_DIM), jnp.float32)

    # key-padding style mask: batch b attends only to the first lengths[b] keys
    lengths = jnp.array([16, 12, 10, 16], dtype=jnp.int32)
    valid = (jnp.arange(SK)[None, :] < lengths[:, None]).astype(jnp.float32)  # (B, Sk)
    mask = jnp.broadcast_to(valid[:, None, :], (B, SQ, SK)).astype(jnp.float32)

    fwd = jax.jit(functools.partial(multi_head_attention, n_heads=N_HEADS))
    out = jax.block_until_ready(fwd(x, x, x, mask, params))   # self-attention

    assert out.shape == (B, SQ, EMBED_DIM) and out.dtype == jnp.float32
    assert bool(jnp.all(jnp.isfinite(out)))

    ref = mha_reference(x, x, x, mask, params, n_heads=N_HEADS)
    np.testing.assert_allclose(np.asarray(out), np.asarray(ref),
                               rtol=2e-2, atol=2e-2)

    print("KERNEL_OK")
</pallas_src>

<mosaic_0001>
module attributes {stable_mosaic.version = 11 : i64} {
  func.func @mha_kernel(%arg0: i32, %arg1: memref<1x16x128xf32, #tpu.memory_space<vmem>>, %arg2: memref<1x16x128xf32, #tpu.memory_space<vmem>>, %arg3: memref<1x16x128xf32, #tpu.memory_space<vmem>>, %arg4: memref<1x16x16xf32, #tpu.memory_space<vmem>>, %arg5: memref<128x128xf32, #tpu.memory_space<vmem>>, %arg6: memref<1x128xf32, #tpu.memory_space<vmem>>, %arg7: memref<128x128xf32, #tpu.memory_space<vmem>>, %arg8: memref<1x128xf32, #tpu.memory_space<vmem>>, %arg9: memref<128x128xf32, #tpu.memory_space<vmem>>, %arg10: memref<1x128xf32, #tpu.memory_space<vmem>>, %arg11: memref<128x128xf32, #tpu.memory_space<vmem>>, %arg12: memref<1x128xf32, #tpu.memory_space<vmem>>, %arg13: memref<1x16x128xf32, #tpu.memory_space<vmem>>) attributes {dimension_semantics = [#tpu.dimension_semantics<parallel>], iteration_bounds = array<i64: 4>, scalar_prefetch = 0 : i64, scratch_operands = 0 : i64, tpu.core_type = #tpu.core_type<tc>, window_params = [{transform_indices = @transform_0, window_bounds = array<i64: 1, 16, 128>}, {transform_indices = @transform_1, window_bounds = array<i64: 1, 16, 128>}, {transform_indices = @transform_2, window_bounds = array<i64: 1, 16, 128>}, {transform_indices = @transform_3, window_bounds = array<i64: 1, 16, 16>}, {pipeline_mode = #tpu.pipeline_mode<synchronous>, transform_indices = @transform_4, window_bounds = array<i64: 128, 128>}, {pipeline_mode = #tpu.pipeline_mode<synchronous>, transform_indices = @transform_5, window_bounds = array<i64: 1, 128>}, {pipeline_mode = #tpu.pipeline_mode<synchronous>, transform_indices = @transform_6, window_bounds = array<i64: 128, 128>}, {pipeline_mode = #tpu.pipeline_mode<synchronous>, transform_indices = @transform_7, window_bounds = array<i64: 1, 128>}, {pipeline_mode = #tpu.pipeline_mode<synchronous>, transform_indices = @transform_8, window_bounds = array<i64: 128, 128>}, {pipeline_mode = #tpu.pipeline_mode<synchronous>, transform_indices = @transform_9, window_bounds = array<i64: 1, 128>}, {pipeline_mode = #tpu.pipeline_mode<synchronous>, transform_indices = @transform_10, window_bounds = array<i64: 128, 128>}, {pipeline_mode = #tpu.pipeline_mode<synchronous>, transform_indices = @transform_11, window_bounds = array<i64: 1, 128>}, {transform_indices = @transform_12, window_bounds = array<i64: 1, 16, 128>}]} {
    %c0 = arith.constant 0 : index
    %c0_0 = arith.constant 0 : index
    %c0_1 = arith.constant 0 : index
    %0 = vector.load %arg1[%c0, %c0_0, %c0_1] : memref<1x16x128xf32, #tpu.memory_space<vmem>>, vector<1x16x128xf32>
    %1 = vector.shape_cast %0 : vector<1x16x128xf32> to vector<16x128xf32>
    %c0_2 = arith.constant 0 : index
    %c0_3 = arith.constant 0 : index
    %c0_4 = arith.constant 0 : index
    %2 = vector.load %arg2[%c0_2, %c0_3, %c0_4] : memref<1x16x128xf32, #tpu.memory_space<vmem>>, vector<1x16x128xf32>
    %3 = vector.shape_cast %2 : vector<1x16x128xf32> to vector<16x128xf32>
    %c0_5 = arith.constant 0 : index
    %c0_6 = arith.constant 0 : index
    %c0_7 = arith.constant 0 : index
    %4 = vector.load %arg3[%c0_5, %c0_6, %c0_7] : memref<1x16x128xf32, #tpu.memory_space<vmem>>, vector<1x16x128xf32>
    %5 = vector.shape_cast %4 : vector<1x16x128xf32> to vector<16x128xf32>
    %c0_8 = arith.constant 0 : index
    %c0_9 = arith.constant 0 : index
    %c0_10 = arith.constant 0 : index
    %6 = vector.load %arg4[%c0_8, %c0_9, %c0_10] : memref<1x16x16xf32, #tpu.memory_space<vmem>>, vector<1x16x16xf32>
    %7 = vector.shape_cast %6 : vector<1x16x16xf32> to vector<16x16xf32>
    %c0_11 = arith.constant 0 : index
    %c0_12 = arith.constant 0 : index
    %8 = vector.load %arg5[%c0_11, %c0_12] : memref<128x128xf32, #tpu.memory_space<vmem>>, vector<128x128xf32>
    %cst = arith.constant dense<0.000000e+00> : vector<16x128xf32>
    %9 = tpu.matmul %1, %8, %cst {dimension_numbers = #tpu.dot_dimension_numbers<[1], [0], [0], [1], [0, 0, 1, 1], [], []>} : vector<16x128xf32>, vector<128x128xf32>, vector<16x128xf32> -> vector<16x128xf32>
    %c0_13 = arith.constant 0 : index
    %c0_14 = arith.constant 0 : index
    %10 = vector.load %arg6[%c0_13, %c0_14] : memref<1x128xf32, #tpu.memory_space<vmem>>, vector<1x128xf32>
    %11 = vector.broadcast %10 : vector<1x128xf32> to vector<16x128xf32>
    %12 = arith.addf %9, %11 : vector<16x128xf32>
    %c0_15 = arith.constant 0 : index
    %c0_16 = arith.constant 0 : index
    %13 = vector.load %arg7[%c0_15, %c0_16] : memref<128x128xf32, #tpu.memory_space<vmem>>, vector<128x128xf32>
    %cst_17 = arith.constant dense<0.000000e+00> : vector<16x128xf32>
    %14 = tpu.matmul %3, %13, %cst_17 {dimension_numbers = #tpu.dot_dimension_numbers<[1], [0], [0], [1], [0, 0, 1, 1], [], []>} : vector<16x128xf32>, vector<128x128xf32>, vector<16x128xf32> -> vector<16x128xf32>
    %c0_18 = arith.constant 0 : index
    %c0_19 = arith.constant 0 : index
    %15 = vector.load %arg8[%c0_18, %c0_19] : memref<1x128xf32, #tpu.memory_space<vmem>>, vector<1x128xf32>
    %16 = vector.broadcast %15 : vector<1x128xf32> to vector<16x128xf32>
    %17 = arith.addf %14, %16 : vector<16x128xf32>
    %c0_20 = arith.constant 0 : index
    %c0_21 = arith.constant 0 : index
    %18 = vector.load %arg9[%c0_20, %c0_21] : memref<128x128xf32, #tpu.memory_space<vmem>>, vector<128x128xf32>
    %cst_22 = arith.constant dense<0.000000e+00> : vector<16x128xf32>
    %19 = tpu.matmul %5, %18, %cst_22 {dimension_numbers = #tpu.dot_dimension_numbers<[1], [0], [0], [1], [0, 0, 1, 1], [], []>} : vector<16x128xf32>, vector<128x128xf32>, vector<16x128xf32> -> vector<16x128xf32>
    %c0_23 = arith.constant 0 : index
    %c0_24 = arith.constant 0 : index
    %20 = vector.load %arg10[%c0_23, %c0_24] : memref<1x128xf32, #tpu.memory_space<vmem>>, vector<1x128xf32>
    %21 = vector.broadcast %20 : vector<1x128xf32> to vector<16x128xf32>
    %22 = arith.addf %19, %21 : vector<16x128xf32>
    %23 = vector.shape_cast %12 : vector<16x128xf32> to vector<16x4x32xf32>
    %24 = tpu.transpose %23, [1, 0, 2] : vector<16x4x32xf32> -> vector<4x16x32xf32>
    %25 = vector.shape_cast %17 : vector<16x128xf32> to vector<16x4x32xf32>
    %26 = tpu.transpose %25, [1, 0, 2] : vector<16x4x32xf32> -> vector<4x16x32xf32>
    %27 = vector.shape_cast %22 : vector<16x128xf32> to vector<16x4x32xf32>
    %28 = tpu.transpose %27, [1, 0, 2] : vector<16x4x32xf32> -> vector<4x16x32xf32>
    "tpu.trace_start"() <{level = 10 : i32, message = "hqd,hkd->hqk"}> : () -> ()
    %cst_25 = arith.constant dense<0.000000e+00> : vector<4x16x16xf32>
    %29 = tpu.matmul %24, %26, %cst_25 {dimension_numbers = #tpu.dot_dimension_numbers<[2], [2], [1], [1], [0, 0, 0, 1, 1, 1], [0], [0]>} : vector<4x16x32xf32>, vector<4x16x32xf32>, vector<4x16x16xf32> -> vector<4x16x16xf32>
    "tpu.trace_stop"() : () -> ()
    %cst_26 = arith.constant 0.0883883461 : f32
    %30 = vector.broadcast %cst_26 : f32 to vector<4x16x16xf32>
    %31 = arith.mulf %29, %30 : vector<4x16x16xf32>
    %32 = vector.shape_cast %7 : vector<16x16xf32> to vector<1x16x16xf32>
    %cst_27 = arith.constant 0.000000e+00 : f32
    %33 = vector.broadcast %cst_27 : f32 to vector<1x16x16xf32>
    %34 = arith.cmpf oeq, %32, %33 : vector<1x16x16xf32>
    %cst_28 = arith.constant -1.000000e-10 : f32
    %35 = vector.shape_cast %34 : vector<1x16x16xi1> to vector<1x16x16xi1>
    %36 = vector.broadcast %35 : vector<1x16x16xi1> to vector<4x16x16xi1>
    %37 = vector.broadcast %cst_28 : f32 to vector<4x16x16xf32>
    %38 = arith.select %36, %37, %31 : vector<4x16x16xi1>, vector<4x16x16xf32>
    %cst_29 = arith.constant dense<0xFF800000> : vector<4x16xf32>
    %39 = vector.multi_reduction <maximumf>, %38, %cst_29 [2] : vector<4x16x16xf32> to vector<4x16xf32>
    %40 = vector.shape_cast %39 : vector<4x16xf32> to vector<4x16x1xf32>
    %41 = vector.broadcast %40 : vector<4x16x1xf32> to vector<4x16x16xf32>
    %42 = arith.subf %38, %41 : vector<4x16x16xf32>
    %43 = math.exp %42 : vector<4x16x16xf32>
    %cst_30 = arith.constant dense<0.000000e+00> : vector<4x16xf32>
    %44 = vector.multi_reduction <add>, %43, %cst_30 [2] : vector<4x16x16xf32> to vector<4x16xf32>
    %45 = vector.shape_cast %44 : vector<4x16xf32> to vector<4x16x1xf32>
    %46 = tpu.reciprocal %45 {approx = true} : vector<4x16x1xf32> -> vector<4x16x1xf32>
    %47 = vector.broadcast %46 : vector<4x16x1xf32> to vector<4x16x16xf32>
    %48 = arith.mulf %43, %47 : vector<4x16x16xf32>
    "tpu.trace_start"() <{level = 10 : i32, message = "hqk,hkd->hqd"}> : () -> ()
    %cst_31 = arith.constant dense<0.000000e+00> : vector<4x16x32xf32>
    %49 = tpu.matmul %48, %28, %cst_31 {dimension_numbers = #tpu.dot_dimension_numbers<[2], [1], [1], [2], [0, 0, 0, 1, 1, 2], [0], [0]>} : vector<4x16x16xf32>, vector<4x16x32xf32>, vector<4x16x32xf32> -> vector<4x16x32xf32>
    "tpu.trace_stop"() : () -> ()
    %50 = tpu.transpose %49, [1, 0, 2] : vector<4x16x32xf32> -> vector<16x4x32xf32>
    %51 = vector.shape_cast %50 : vector<16x4x32xf32> to vector<16x128xf32>
    %c0_32 = arith.constant 0 : index
    %c0_33 = arith.constant 0 : index
    %52 = vector.load %arg11[%c0_32, %c0_33] : memref<128x128xf32, #tpu.memory_space<vmem>>, vector<128x128xf32>
    %cst_34 = arith.constant dense<0.000000e+00> : vector<16x128xf32>
    %53 = tpu.matmul %51, %52, %cst_34 {dimension_numbers = #tpu.dot_dimension_numbers<[1], [0], [0], [1], [0, 0, 1, 1], [], []>} : vector<16x128xf32>, vector<128x128xf32>, vector<16x128xf32> -> vector<16x128xf32>
    %c0_35 = arith.constant 0 : index
    %c0_36 = arith.constant 0 : index
    %54 = vector.load %arg12[%c0_35, %c0_36] : memref<1x128xf32, #tpu.memory_space<vmem>>, vector<1x128xf32>
    %55 = vector.broadcast %54 : vector<1x128xf32> to vector<16x128xf32>
    %56 = arith.addf %53, %55 : vector<16x128xf32>
    %c0_37 = arith.constant 0 : index
    %c0_38 = arith.constant 0 : index
    %c0_39 = arith.constant 0 : index
    %57 = vector.load %arg13[%c0_37, %c0_38, %c0_39] : memref<1x16x128xf32, #tpu.memory_space<vmem>>, vector<1x16x128xf32>
    %58 = vector.shape_cast %57 : vector<1x16x128xf32> to vector<16x128xf32>
    %59 = vector.shape_cast %56 : vector<16x128xf32> to vector<1x16x128xf32>
    tpu.vector_store %arg13[%c0_37, %c0_38, %c0_39], %59 {strides = array<i32>} : memref<1x16x128xf32, #tpu.memory_space<vmem>>, vector<1x16x128xf32>,
    return
  }
  func.func @transform_0(%arg0: i32) -> (i32, i32, i32) {
    %c0_i32 = arith.constant 0 : i32
    %c0_i32_0 = arith.constant 0 : i32
    %c0_i32_1 = arith.constant 0 : i32
    return %arg0, %c0_i32, %c0_i32_0 : i32, i32, i32
  }
  func.func @transform_1(%arg0: i32) -> (i32, i32, i32) {
    %c0_i32 = arith.constant 0 : i32
    %c0_i32_0 = arith.constant 0 : i32
    %c0_i32_1 = arith.constant 0 : i32
    return %arg0, %c0_i32, %c0_i32_0 : i32, i32, i32
  }
  func.func @transform_2(%arg0: i32) -> (i32, i32, i32) {
    %c0_i32 = arith.constant 0 : i32
    %c0_i32_0 = arith.constant 0 : i32
    %c0_i32_1 = arith.constant 0 : i32
    return %arg0, %c0_i32, %c0_i32_0 : i32, i32, i32
  }
  func.func @transform_3(%arg0: i32) -> (i32, i32, i32) {
    %c0_i32 = arith.constant 0 : i32
    %c0_i32_0 = arith.constant 0 : i32
    %c0_i32_1 = arith.constant 0 : i32
    return %arg0, %c0_i32, %c0_i32_0 : i32, i32, i32
  }
  func.func @transform_4(%arg0: i32) -> (i32, i32) {
    %c0_i32 = arith.constant 0 : i32
    %c0_i32_0 = arith.constant 0 : i32
    %c0_i32_1 = arith.constant 0 : i32
    return %c0_i32, %c0_i32_0 : i32, i32
  }
  func.func @transform_5(%arg0: i32) -> (i32, i32) {
    %c0_i32 = arith.constant 0 : i32
    %c0_i32_0 = arith.constant 0 : i32
    %c0_i32_1 = arith.constant 0 : i32
    return %c0_i32, %c0_i32_0 : i32, i32
  }
  func.func @transform_6(%arg0: i32) -> (i32, i32) {
    %c0_i32 = arith.constant 0 : i32
    %c0_i32_0 = arith.constant 0 : i32
    %c0_i32_1 = arith.constant 0 : i32
    return %c0_i32, %c0_i32_0 : i32, i32
  }
  func.func @transform_7(%arg0: i32) -> (i32, i32) {
    %c0_i32 = arith.constant 0 : i32
    %c0_i32_0 = arith.constant 0 : i32
    %c0_i32_1 = arith.constant 0 : i32
    return %c0_i32, %c0_i32_0 : i32, i32
  }
  func.func @transform_8(%arg0: i32) -> (i32, i32) {
    %c0_i32 = arith.constant 0 : i32
    %c0_i32_0 = arith.constant 0 : i32
    %c0_i32_1 = arith.constant 0 : i32
    return %c0_i32, %c0_i32_0 : i32, i32
  }
  func.func @transform_9(%arg0: i32) -> (i32, i32) {
    %c0_i32 = arith.constant 0 : i32
    %c0_i32_0 = arith.constant 0 : i32
    %c0_i32_1 = arith.constant 0 : i32
    return %c0_i32, %c0_i32_0 : i32, i32
  }
  func.func @transform_10(%arg0: i32) -> (i32, i32) {
    %c0_i32 = arith.constant 0 : i32
    %c0_i32_0 = arith.constant 0 : i32
    %c0_i32_1 = arith.constant 0 : i32
    return %c0_i32, %c0_i32_0 : i32, i32
  }
  func.func @transform_11(%arg0: i32) -> (i32, i32) {
    %c0_i32 = arith.constant 0 : i32
    %c0_i32_0 = arith.constant 0 : i32
    %c0_i32_1 = arith.constant 0 : i32
    return %c0_i32, %c0_i32_0 : i32, i32
  }
  func.func @transform_12(%arg0: i32) -> (i32, i32, i32) {
    %c0_i32 = arith.constant 0 : i32
    %c0_i32_0 = arith.constant 0 : i32
    %c0_i32_1 = arith.constant 0 : i32
    return %arg0, %c0_i32, %c0_i32_0 : i32, i32, i32
  }
}

</mosaic_0001>

<llo_original>
// kernel: multi_head_attention.1
$region0: #{multi_head_attention.1}
  #allocation0 [shape = 'u32[]', space=smem, size = 0x4, offset = 0x4, fixed_abs, tag = 'smem constant byte address 0x4 - core index']
  #allocation1 [shape = 'u32[144,128]{1,0:T(1,128)}', space=vmem, size = 0x12000, scoped, tag = 'internal scratch']
  %s0 = inlined_call_operand.hbm [shape: f32[4,16,128], index: 0, kind: input, shape index: {}]
  %s1 = inlined_call_operand.hbm [shape: f32[4,16,128], index: 1, kind: input, shape index: {}]
  %s2 = inlined_call_operand.hbm [shape: f32[4,16,128], index: 2, kind: input, shape index: {}]
  %s3 = inlined_call_operand.hbm [shape: f32[4,16,16], index: 3, kind: input, shape index: {}]
  %s4 = inlined_call_operand.hbm [shape: f32[128,128], index: 4, kind: input, shape index: {}]
  %s5 = inlined_call_operand.vmem [shape: f32[1,128], index: 5, kind: input, shape index: {}]
  %s6 = inlined_call_operand.hbm [shape: f32[128,128], index: 6, kind: input, shape index: {}]
  %s7 = inlined_call_operand.vmem [shape: f32[1,128], index: 7, kind: input, shape index: {}]
  %s8 = inlined_call_operand.hbm [shape: f32[128,128], index: 8, kind: input, shape index: {}]
  %s9 = inlined_call_operand.vmem [shape: f32[1,128], index: 9, kind: input, shape index: {}]
  %s10 = inlined_call_operand.hbm [shape: f32[128,128], index: 10, kind: input, shape index: {}]
  %s11 = inlined_call_operand.vmem [shape: f32[1,128], index: 11, kind: input, shape index: {}]
  %s12 = inlined_call_operand.hbm [shape: f32[4,16,128], index: 12, kind: output, shape index: {}]
  %s13 = sld [smem:[#allocation0]]
  $region113: #{multi_head_attention.1} parent=0
    _
  %s15 = ssub.s32 1, %s13
  %s16 = scalar_select 0, %s15, %s13
  $region1: #{multi_head_attention.1} parent=0
    #allocation2 [shape = 'u8[16384]{0}', space=vmem, size = 0x4000, scoped, tag = 'input window, operand 0']
    #allocation3 [shape = 's32[2]{0}', space=sflag, size = 0x8, scoped, tag = 'scoped memory for multi_head_attention.1']
    #allocation4 [shape = 's32[2]{0}', space=sflag, size = 0x8, scoped, tag = 'scoped memory for multi_head_attention.1']
    #allocation5 [shape = 'u8[16384]{0}', space=vmem, size = 0x4000, scoped, tag = 'input window, operand 1']
    #allocation6 [shape = 's32[2]{0}', space=sflag, size = 0x8, scoped, tag = 'scoped memory for multi_head_attention.1']
    #allocation7 [shape = 'u8[16384]{0}', space=vmem, size = 0x4000, scoped, tag = 'input window, operand 2']
    #allocation8 [shape = 'u8[16384]{0}', space=vmem, size = 0x4000, scoped, tag = 'input window, operand 3']
    #allocation9 [shape = 's32[2]{0}', space=sflag, size = 0x8, scoped, tag = 'scoped memory for multi_head_attention.1']
    #allocation10 [shape = 'u8[65536]{0}', space=vmem, size = 0x10000, scoped, tag = 'input window, operand 4, single buffered']
    #allocation11 [shape = 'u8[65536]{0}', space=vmem, size = 0x10000, scoped, tag = 'input window, operand 6, single buffered']
    #allocation12 [shape = 's32[1]{0}', space=sflag, size = 0x4, scoped, tag = 'scoped memory for multi_head_attention.1']
    #allocation13 [shape = 'u8[65536]{0}', space=vmem, size = 0x10000, scoped, tag = 'input window, operand 8, single buffered']
    #allocation14 [shape = 'u8[65536]{0}', space=vmem, size = 0x10000, scoped, tag = 'input window, operand 10, single buffered']
    #allocation15 [shape = 's32[1]{0}', space=sflag, size = 0x4, scoped, tag = 'scoped memory for multi_head_attention.1']
    #allocation16 [shape = 'u8[16384]{0}', space=vmem, size = 0x4000, scoped, tag = 'output window, operand 0']
    %17 = vsyncpa [#allocation3], 0
    %s18 = scalar_lea.sflag [#allocation3], 1
    %19 = vsyncpa %s18, 0
    %20 = vsyncpa [#allocation6], 0
    %s21 = scalar_lea.sflag [#allocation6], 1
    %22 = vsyncpa %s21, 0
    %23 = vsyncpa [#allocation9], 0
    %s24 = scalar_lea.sflag [#allocation9], 1
    %25 = vsyncpa %s24, 0
    %26 = vsyncpa [#allocation12], 0
    %27 = vsyncpa [#allocation15], 0
    %28 = vsyncpa [#allocation4], 0
    %s29 = scalar_lea.sflag [#allocation4], 1
    %30 = vsyncpa %s29, 0
    loop: start=0, step=1, limit=6
    $region2: #{multi_head_attention.1} parent=1 // loop_pre_header
      _
    $region3: #{multi_head_attention.1} parent=1 // loop_header
      %s32 = sphi 0, %s36
      %p33 = scmp.ge.s32.totalorder %s32, 6
      %s42 = sphi 0, %s44
      %s45 = sphi 0, %s42
      %s46 = sphi 0, %s45
      %s62 = sphi 0, %s46
      %s68 = sphi 0, %s70
      %s71 = sphi 0, %s68
      %s72 = sphi 0, %s71
      %s88 = sphi 0, %s72
      %s94 = sphi 0, %s96
      %s97 = sphi 0, %s94
      %s98 = sphi 0, %s97
      %s114 = sphi 0, %s98
      %s120 = sphi 0, %s122
      %s123 = sphi 0, %s120
      %s124 = sphi 0, %s123
      %s140 = sphi 0, %s124
      %s144 = sphi 0, %s144
      %s146 = sphi 0, %s144
      %s147 = sphi 0, %s146
      %s161 = sphi 0, %s147
      %s165 = sphi 0, %s165
      %s167 = sphi 0, %s165
      %s168 = sphi 0, %s167
      %s182 = sphi 0, %s168
      %s186 = sphi 0, %s186
      %s188 = sphi 0, %s186
      %s189 = sphi 0, %s188
      %s203 = sphi 0, %s189
      %s207 = sphi 0, %s207
      %s209 = sphi 0, %s207
      %s210 = sphi 0, %s209
      %s224 = sphi 0, %s210
      %s228 = sphi 0, %s228
      %s230 = sphi 0, %s228
      %s231 = sphi 0, %s230
      %s245 = sphi 0, %s231
      %s249 = sphi 0, %s249
      %s251 = sphi 0, %s249
      %s252 = sphi 0, %s251
      %s266 = sphi 0, %s252
      %s270 = sphi 0, %s270
      %s272 = sphi 0, %s270
      %s273 = sphi 0, %s272
      %s287 = sphi 0, %s273
      %s291 = sphi 0, %s291
      %s293 = sphi 0, %s291
      %s294 = sphi 0, %s293
      %s308 = sphi 0, %s294
      %s314 = sphi 0, %s316
      %s317 = sphi 0, %s314
      %s318 = sphi 0, %s317
      %s334 = sphi 0, %s318
    $region4: #{multi_head_attention.1} parent=1 // loop_header_branch
      %35 = sbr.rel (%p33) target = $region8
    $region5: #{multi_head_attention.1} parent=1 // loop_body
      %s37 = ssub.s32 %s32, 1
      %s38 = ssub.s32 %s32, 2
      %s39 = sadd.s32 %s32, 1
      %s40 = ssub.s32 %s32, %s39
      %p41 = scmp.eq.s32.totalorder %s40, 0
      %s43 = sadd.s32 %s42, 1
      %s44 = scalar_select %p41, %s42, %s43
      %p47 = pneg %p41
      %p48 = scmp.eq.s32.totalorder %s32, 3
      %p49 = por %p47, %p48
      %p50 = scmp.ne.s32.totalorder %s42, %s45
      %p51 = scmp.eq.s32.totalorder %s32, 0
      %p52 = por %p50, %p51
      %p53 = scmp.ne.s32.totalorder %s42, %s45
      %p54 = scmp.eq.s32.totalorder %s37, 3
      %p55 = por %p53, %p54
      %p56 = scmp.ne.s32.totalorder %s45, %s46
      %p57 = scmp.eq.s32.totalorder %s37, 0
      %p58 = por %p56, %p57
      %p59 = scmp.ne.s32.totalorder %s45, %s46
      %p60 = scmp.eq.s32.totalorder %s38, 3
      %p61 = por %p59, %p60
      %p63 = scmp.ne.s32.totalorder %s46, %s62
      %p64 = scmp.eq.s32.totalorder %s38, 0
      %p65 = por %p63, %p64
      %s66 = ssub.s32 %s32, %s39
      %p67 = scmp.eq.s32.totalorder %s66, 0
      %s69 = sadd.s32 %s68, 1
      %s70 = scalar_select %p67, %s68, %s69
      %p73 = pneg %p67
      %p74 = scmp.eq.s32.totalorder %s32, 3
      %p75 = por %p73, %p74
      %p76 = scmp.ne.s32.totalorder %s68, %s71
      %p77 = scmp.eq.s32.totalorder %s32, 0
      %p78 = por %p76, %p77
      %p79 = scmp.ne.s32.totalorder %s68, %s71
      %p80 = scmp.eq.s32.totalorder %s37, 3
      %p81 = por %p79, %p80
      %p82 = scmp.ne.s32.totalorder %s71, %s72
      %p83 = scmp.eq.s32.totalorder %s37, 0
      %p84 = por %p82, %p83
      %p85 = scmp.ne.s32.totalorder %s71, %s72
      %p86 = scmp.eq.s32.totalorder %s38, 3
      %p87 = por %p85, %p86
      %p89 = scmp.ne.s32.totalorder %s72, %s88
      %p90 = scmp.eq.s32.totalorder %s38, 0
      %p91 = por %p89, %p90
      %s92 = ssub.s32 %s32, %s39
      %p93 = scmp.eq.s32.totalorder %s92, 0
      %s95 = sadd.s32 %s94, 1
      %s96 = scalar_select %p93, %s94, %s95
      %p99 = pneg %p93
      %p100 = scmp.eq.s32.totalorder %s32, 3
      %p101 = por %p99, %p100
      %p102 = scmp.ne.s32.totalorder %s94, %s97
      %p103 = scmp.eq.s32.totalorder %s32, 0
      %p104 = por %p102, %p103
      %p105 = scmp.ne.s32.totalorder %s94, %s97
      %p106 = scmp.eq.s32.totalorder %s37, 3
      %p107 = por %p105, %p106
      %p108 = scmp.ne.s32.totalorder %s97, %s98
      %p109 = scmp.eq.s32.totalorder %s37, 0
      %p110 = por %p108, %p109
      %p111 = scmp.ne.s32.totalorder %s97, %s98
      %p112 = scmp.eq.s32.totalorder %s38, 3
      %p113 = por %p111, %p112
      %p115 = scmp.ne.s32.totalorder %s98, %s114
      %p116 = scmp.eq.s32.totalorder %s38, 0
      %p117 = por %p115, %p116
      %s118 = ssub.s32 %s32, %s39
      %p119 = scmp.eq.s32.totalorder %s118, 0
      %s121 = sadd.s32 %s120, 1
      %s122 = scalar_select %p119, %s120, %s121
      %p125 = pneg %p119
      %p126 = scmp.eq.s32.totalorder %s32, 3
      %p127 = por %p125, %p126
      %p128 = scmp.ne.s32.totalorder %s120, %s123
      %p129 = scmp.eq.s32.totalorder %s32, 0
      %p130 = por %p128, %p129
      %p131 = scmp.ne.s32.totalorder %s120, %s123
      %p132 = scmp.eq.s32.totalorder %s37, 3
      %p133 = por %p131, %p132
      %p134 = scmp.ne.s32.totalorder %s123, %s124
      %p135 = scmp.eq.s32.totalorder %s37, 0
      %p136 = por %p134, %p135
      %p137 = scmp.ne.s32.totalorder %s123, %s124
      %p138 = scmp.eq.s32.totalorder %s38, 3
      %p139 = por %p137, %p138
      %p141 = scmp.ne.s32.totalorder %s124, %s140
      %p142 = scmp.eq.s32.totalorder %s38, 0
      %p143 = por %p141, %p142
      %s145 = sadd.s32 %s144, 1
      %p148 = scmp.eq.s32.totalorder %s32, 3
      %p149 = scmp.ne.s32.totalorder %s144, %s146
      %p150 = scmp.eq.s32.totalorder %s32, 0
      %p151 = por %p149, %p150
      %p152 = scmp.ne.s32.totalorder %s144, %s146
      %p153 = scmp.eq.s32.totalorder %s37, 3
      %p154 = por %p152, %p153
      %p155 = scmp.ne.s32.totalorder %s146, %s147
      %p156 = scmp.eq.s32.totalorder %s37, 0
      %p157 = por %p155, %p156
      %p158 = scmp.ne.s32.totalorder %s146, %s147
      %p159 = scmp.eq.s32.totalorder %s38, 3
      %p160 = por %p158, %p159
      %p162 = scmp.ne.s32.totalorder %s147, %s161
      %p163 = scmp.eq.s32.totalorder %s38, 0
      %p164 = por %p162, %p163
      %s166 = sadd.s32 %s165, 1
      %p169 = scmp.eq.s32.totalorder %s32, 3
      %p170 = scmp.ne.s32.totalorder %s165, %s167
      %p171 = scmp.eq.s32.totalorder %s32, 0
      %p172 = por %p170, %p171
      %p173 = scmp.ne.s32.totalorder %s165, %s167
      %p174 = scmp.eq.s32.totalorder %s37, 3
      %p175 = por %p173, %p174
      %p176 = scmp.ne.s32.totalorder %s167, %s168
      %p177 = scmp.eq.s32.totalorder %s37, 0
      %p178 = por %p176, %p177
      %p179 = scmp.ne.s32.totalorder %s167, %s168
      %p180 = scmp.eq.s32.totalorder %s38, 3
      %p181 = por %p179, %p180
      %p183 = scmp.ne.s32.totalorder %s168, %s182
      %p184 = scmp.eq.s32.totalorder %s38, 0
      %p185 = por %p183, %p184
      %s187 = sadd.s32 %s186, 1
      %p190 = scmp.eq.s32.totalorder %s32, 3
      %p191 = scmp.ne.s32.totalorder %s186, %s188
      %p192 = scmp.eq.s32.totalorder %s32, 0
      %p193 = por %p191, %p192
      %p194 = scmp.ne.s32.totalorder %s186, %s188
      %p195 = scmp.eq.s32.totalorder %s37, 3
      %p196 = por %p194, %p195
      %p197 = scmp.ne.s32.totalorder %s188, %s189
      %p198 = scmp.eq.s32.totalorder %s37, 0
      %p199 = por %p197, %p198
      %p200 = scmp.ne.s32.totalorder %s188, %s189
      %p201 = scmp.eq.s32.totalorder %s38, 3
      %p202 = por %p200, %p201
      %p204 = scmp.ne.s32.totalorder %s189, %s203
      %p205 = scmp.eq.s32.totalorder %s38, 0
      %p206 = por %p204, %p205
      %s208 = sadd.s32 %s207, 1
      %p211 = scmp.eq.s32.totalorder %s32, 3
      %p212 = scmp.ne.s32.totalorder %s207, %s209
      %p213 = scmp.eq.s32.totalorder %s32, 0
      %p214 = por %p212, %p213
      %p215 = scmp.ne.s32.totalorder %s207, %s209
      %p216 = scmp.eq.s32.totalorder %s37, 3
      %p217 = por %p215, %p216
      %p218 = scmp.ne.s32.totalorder %s209, %s210
      %p219 = scmp.eq.s32.totalorder %s37, 0
      %p220 = por %p218, %p219
      %p221 = scmp.ne.s32.totalorder %s209, %s210
      %p222 = scmp.eq.s32.totalorder %s38, 3
      %p223 = por %p221, %p222
      %p225 = scmp.ne.s32.totalorder %s210, %s224
      %p226 = scmp.eq.s32.totalorder %s38, 0
      %p227 = por %p225, %p226
      %s229 = sadd.s32 %s228, 1
      %p232 = scmp.eq.s32.totalorder %s32, 3
      %p233 = scmp.ne.s32.totalorder %s228, %s230
      %p234 = scmp.eq.s32.totalorder %s32, 0
      %p235 = por %p233, %p234
      %p236 = scmp.ne.s32.totalorder %s228, %s230
      %p237 = scmp.eq.s32.totalorder %s37, 3
      %p238 = por %p236, %p237
      %p239 = scmp.ne.s32.totalorder %s230, %s231
      %p240 = scmp.eq.s32.totalorder %s37, 0
      %p241 = por %p239, %p240
      %p242 = scmp.ne.s32.totalorder %s230, %s231
      %p243 = scmp.eq.s32.totalorder %s38, 3
      %p244 = por %p242, %p243
      %p246 = scmp.ne.s32.totalorder %s231, %s245
      %p247 = scmp.eq.s32.totalorder %s38, 0
      %p248 = por %p246, %p247
      %s250 = sadd.s32 %s249, 1
      %p253 = scmp.eq.s32.totalorder %s32, 3
      %p254 = scmp.ne.s32.totalorder %s249, %s251
      %p255 = scmp.eq.s32.totalorder %s32, 0
      %p256 = por %p254, %p255
      %p257 = scmp.ne.s32.totalorder %s249, %s251
      %p258 = scmp.eq.s32.totalorder %s37, 3
      %p259 = por %p257, %p258
      %p260 = scmp.ne.s32.totalorder %s251, %s252
      %p261 = scmp.eq.s32.totalorder %s37, 0
      %p262 = por %p260, %p261
      %p263 = scmp.ne.s32.totalorder %s251, %s252
      %p264 = scmp.eq.s32.totalorder %s38, 3
      %p265 = por %p263, %p264
      %p267 = scmp.ne.s32.totalorder %s252, %s266
      %p268 = scmp.eq.s32.totalorder %s38, 0
      %p269 = por %p267, %p268
      %s271 = sadd.s32 %s270, 1
      %p274 = scmp.eq.s32.totalorder %s32, 3
      %p275 = scmp.ne.s32.totalorder %s270, %s272
      %p276 = scmp.eq.s32.totalorder %s32, 0
      %p277 = por %p275, %p276
      %p278 = scmp.ne.s32.totalorder %s270, %s272
      %p279 = scmp.eq.s32.totalorder %s37, 3
      %p280 = por %p278, %p279
      %p281 = scmp.ne.s32.totalorder %s272, %s273
      %p282 = scmp.eq.s32.totalorder %s37, 0
      %p283 = por %p281, %p282
      %p284 = scmp.ne.s32.totalorder %s272, %s273
      %p285 = scmp.eq.s32.totalorder %s38, 3
      %p286 = por %p284, %p285
      %p288 = scmp.ne.s32.totalorder %s273, %s287
      %p289 = scmp.eq.s32.totalorder %s38, 0
      %p290 = por %p288, %p289
      %s292 = sadd.s32 %s291, 1
      %p295 = scmp.eq.s32.totalorder %s32, 3
      %p296 = scmp.ne.s32.totalorder %s291, %s293
      %p297 = scmp.eq.s32.totalorder %s32, 0
      %p298 = por %p296, %p297
      %p299 = scmp.ne.s32.totalorder %s291, %s293
      %p300 = scmp.eq.s32.totalorder %s37, 3
      %p301 = por %p299, %p300
      %p302 = scmp.ne.s32.totalorder %s293, %s294
      %p303 = scmp.eq.s32.totalorder %s37, 0
      %p304 = por %p302, %p303
      %p305 = scmp.ne.s32.totalorder %s293, %s294
      %p306 = scmp.eq.s32.totalorder %s38, 3
      %p307 = por %p305, %p306
      %p309 = scmp.ne.s32.totalorder %s294, %s308
      %p310 = scmp.eq.s32.totalorder %s38, 0
      %p311 = por %p309, %p310
      %s312 = ssub.s32 %s32, %s39
      %p313 = scmp.eq.s32.totalorder %s312, 0
      %s315 = sadd.s32 %s314, 1
      %s316 = scalar_select %p313, %s314, %s315
      %p319 = pneg %p313
      %p320 = scmp.eq.s32.totalorder %s32, 3
      %p321 = por %p319, %p320
      %p322 = scmp.ne.s32.totalorder %s314, %s317
      %p323 = scmp.eq.s32.totalorder %s32, 0
      %p324 = por %p322, %p323
      %p325 = scmp.ne.s32.totalorder %s314, %s317
      %p326 = scmp.eq.s32.totalorder %s37, 3
      %p327 = por %p325, %p326
      %p328 = scmp.ne.s32.totalorder %s317, %s318
      %p329 = scmp.eq.s32.totalorder %s37, 0
      %p330 = por %p328, %p329
      %p331 = scmp.ne.s32.totalorder %s317, %s318
      %p332 = scmp.eq.s32.totalorder %s38, 3
      %p333 = por %p331, %p332
      %p335 = scmp.ne.s32.totalorder %s318, %s334
      %p336 = scmp.eq.s32.totalorder %s38, 0
      %p337 = por %p335, %p336
      %p338 = scmp.le.s32.totalorder 1, %s32
      %p339 = scmp.lt.s32.totalorder %s32, 5
      %p340 = pnand %p338, %p339
      %p341 = pneg %p340
      // Predicated region
      $region9: #{multi_head_attention.1} parent=5 // pred_check
        _
      $region10: #{multi_head_attention.1} parent=5 // pred_check_branch
        %343 = sbr.rel (%p340) target = $region12
      $region11: #{multi_head_attention.1} parent=5 // pred_region
        %s344 = ssub.s32 %s32, 1
        // Predicated region
        $region13: #{multi_head_attention.1} parent=11 // pred_check
          %p345 = pneg %p157
        $region14: #{multi_head_attention.1} parent=11 // pred_check_branch
          %347 = sbr.rel (%p345) target = $region16
        $region15: #{multi_head_attention.1} parent=11 // pred_region
          %s349 = ssub.s32 2048, 2048
          %350 = vsyncadd [#allocation9], %s349
          %s351 = sshll.u32 [#allocation10], 4
          %s352 = int_to_ptr.vmem [resolvable:$true] %s351
          %357 = dma.hbm_to_vmem [thread:$0]  %s4, 2048, %s352, [#allocation9], 128, 128, 8
        $region16: #{multi_head_attention.1} parent=11 // pred_fallthru
          _
        // Predicated region
        $region17: #{multi_head_attention.1} parent=11 // pred_check
          %p358 = pneg %p178
        $region18: #{multi_head_attention.1} parent=11 // pred_check_branch
          %360 = sbr.rel (%p358) target = $region20
        $region19: #{multi_head_attention.1} parent=11 // pred_region
          _
        $region20: #{multi_head_attention.1} parent=11 // pred_fallthru
          _
        // Predicated region
        $region21: #{multi_head_attention.1} parent=11 // pred_check
          %p361 = pneg %p199
        $region22: #{multi_head_attention.1} parent=11 // pred_check_branch
          %363 = sbr.rel (%p361) target = $region24
        $region23: #{multi_head_attention.1} parent=11 // pred_region
          %s365 = ssub.s32 2048, 2048
          %366 = vsyncadd [#allocation12], %s365
          %s367 = sshll.u32 [#allocation11], 4
          %s368 = int_to_ptr.vmem [resolvable:$true] %s367
          %373 = dma.hbm_to_vmem [thread:$0]  %s6, 2048, %s368, [#allocation12], 128, 128, 8
        $region24: #{multi_head_attention.1} parent=11 // pred_fallthru
          _
        // Predicated region
        $region25: #{multi_head_attention.1} parent=11 // pred_check
          %p374 = pneg %p220
        $region26: #{multi_head_attention.1} parent=11 // pred_check_branch
          %376 = sbr.rel (%p374) target = $region28
        $region27: #{multi_head_attention.1} parent=11 // pred_region
          _
        $region28: #{multi_head_attention.1} parent=11 // pred_fallthru
          _
        // Predicated region
        $region29: #{multi_head_attention.1} parent=11 // pred_check
          %p377 = pneg %p241
        $region30: #{multi_head_attention.1} parent=11 // pred_check_branch
          %379 = sbr.rel (%p377) target = $region32
        $region31: #{multi_head_attention.1} parent=11 // pred_region
          %s381 = ssub.s32 2048, 2048
          %382 = vsyncadd [#allocation12], %s381
          %s383 = sshll.u32 [#allocation13], 4
          %s384 = int_to_ptr.vmem [resolvable:$true] %s383
          %389 = dma.hbm_to_vmem [thread:$0]  %s8, 2048, %s384, [#allocation12], 128, 128, 8
        $region32: #{multi_head_attention.1} parent=11 // pred_fallthru
          _
        // Predicated region
        $region33: #{multi_head_attention.1} parent=11 // pred_check
          %p390 = pneg %p262
        $region34: #{multi_head_attention.1} parent=11 // pred_check_branch
          %392 = sbr.rel (%p390) target = $region36
        $region35: #{multi_head_attention.1} parent=11 // pred_region
          _
        $region36: #{multi_head_attention.1} parent=11 // pred_fallthru
          _
        // Predicated region
        $region37: #{multi_head_attention.1} parent=11 // pred_check
          %p393 = pneg %p283
        $region38: #{multi_head_attention.1} parent=11 // pred_check_branch
          %395 = sbr.rel (%p393) target = $region40
        $region39: #{multi_head_attention.1} parent=11 // pred_region
          %s397 = ssub.s32 2048, 2048
          %398 = vsyncadd [#allocation15], %s397
          %s399 = sshll.u32 [#allocation14], 4
          %s400 = int_to_ptr.vmem [resolvable:$true] %s399
          %405 = dma.hbm_to_vmem [thread:$0]  %s10, 2048, %s400, [#allocation15], 128, 128, 8
        $region40: #{multi_head_attention.1} parent=11 // pred_fallthru
          _
        // Predicated region
        $region41: #{multi_head_attention.1} parent=11 // pred_check
          %p406 = pneg %p304
        $region42: #{multi_head_attention.1} parent=11 // pred_check_branch
          %408 = sbr.rel (%p406) target = $region44
        $region43: #{multi_head_attention.1} parent=11 // pred_region
          _
        $region44: #{multi_head_attention.1} parent=11 // pred_fallthru
          _
      $region12: #{multi_head_attention.1} parent=5 // pred_fallthru
        _
      %p409 = scmp.lt.s32.totalorder %s32, 4
      // Predicated region
      $region45: #{multi_head_attention.1} parent=5 // pred_check
        %p410 = pneg %p409
      $region46: #{multi_head_attention.1} parent=5 // pred_check_branch
        %412 = sbr.rel (%p410) target = $region48
      $region47: #{multi_head_attention.1} parent=5 // pred_region
        // Predicated region
        $region49: #{multi_head_attention.1} parent=47 // pred_check
          %p413 = pneg %p52
        $region50: #{multi_head_attention.1} parent=47 // pred_check_branch
          %415 = sbr.rel (%p413) target = $region52
        $region51: #{multi_head_attention.1} parent=47 // pred_region
          %s416 = sand.u32 %s42, 1
          %s417 = scalar_lea.sflag [#allocation3], %s416
          %s418 = sand.u32 %s42, 1
          %s419 = smul.addr %s418, 16
          %s420 = scalar_lea.vmem [#allocation2], %s419
          %s422 = ssub.s32 256, 256
          %423 = vsyncadd %s417, %s422
          %s424 = smul.addr %s32, 2
          %s425 = smul.addr %s424, 128
          %s426 = scalar_lea.hbm %s0, %s425
          %s427 = sshll.u32 %s420, 4
          %s428 = int_to_ptr.vmem [resolvable:$true] %s427
          %433 = dma.hbm_to_vmem [thread:$0]  %s426, 256, %s428, %s417, 128, 128, 8
        $region52: #{multi_head_attention.1} parent=47 // pred_fallthru
          _
        // Predicated region
        $region53: #{multi_head_attention.1} parent=47 // pred_check
          %p434 = pneg %p78
        $region54: #{multi_head_attention.1} parent=47 // pred_check_branch
          %436 = sbr.rel (%p434) target = $region56
        $region55: #{multi_head_attention.1} parent=47 // pred_region
          %s437 = sand.u32 %s32, 1
          %s438 = scalar_lea.sflag [#allocation6], %s437
          %s439 = sand.u32 %s68, 1
          %s440 = smul.addr %s439, 16
          %s441 = scalar_lea.vmem [#allocation5], %s440
          %s443 = ssub.s32 256, 256
          %444 = vsyncadd %s438, %s443
          %s445 = smul.addr %s32, 2
          %s446 = smul.addr %s445, 128
          %s447 = scalar_lea.hbm %s1, %s446
          %s448 = sshll.u32 %s441, 4
          %s449 = int_to_ptr.vmem [resolvable:$true] %s448
          %454 = dma.hbm_to_vmem [thread:$0]  %s447, 256, %s449, %s438, 128, 128, 8
        $region56: #{multi_head_attention.1} parent=47 // pred_fallthru
          _
        // Predicated region
        $region57: #{multi_head_attention.1} parent=47 // pred_check
          %p455 = pneg %p104
        $region58: #{multi_head_attention.1} parent=47 // pred_check_branch
          %457 = sbr.rel (%p455) target = $region60
        $region59: #{multi_head_attention.1} parent=47 // pred_region
          %s458 = sand.u32 %s32, 1
          %s459 = scalar_lea.sflag [#allocation6], %s458
          %s460 = sand.u32 %s94, 1
          %s461 = smul.addr %s460, 16
          %s462 = scalar_lea.vmem [#allocation7], %s461
          %s464 = ssub.s32 256, 256
          %465 = vsyncadd %s459, %s464
          %s466 = smul.addr %s32, 2
          %s467 = smul.addr %s466, 128
          %s468 = scalar_lea.hbm %s2, %s467
          %s469 = sshll.u32 %s462, 4
          %s470 = int_to_ptr.vmem [resolvable:$true] %s469
          %475 = dma.hbm_to_vmem [thread:$0]  %s468, 256, %s470, %s459, 128, 128, 8
        $region60: #{multi_head_attention.1} parent=47 // pred_fallthru
          _
        // Predicated region
        $region61: #{multi_head_attention.1} parent=47 // pred_check
          %p476 = pneg %p130
        $region62: #{multi_head_attention.1} parent=47 // pred_check_branch
          %478 = sbr.rel (%p476) target = $region64
        $region63: #{multi_head_attention.1} parent=47 // pred_region
          %s479 = sand.u32 %s32, 1
          %s480 = scalar_lea.sflag [#allocation9], %s479
          %s481 = sand.u32 %s120, 1
          %s482 = smul.addr %s481, 16
          %s483 = scalar_lea.vmem [#allocation8], %s482
          %s485 = ssub.s32 256, 256
          %486 = vsyncadd %s480, %s485
          %s487 = smul.addr %s32, 2
          %s488 = smul.addr %s487, 128
          %s489 = scalar_lea.hbm %s3, %s488
          %s490 = sshll.u32 %s483, 4
          %s491 = int_to_ptr.vmem [resolvable:$true] %s490
          %496 = dma.hbm_to_vmem [thread:$0]  %s489, 256, %s491, %s480, 128, 128, 8
        $region64: #{multi_head_attention.1} parent=47 // pred_fallthru
          _
      $region48: #{multi_head_attention.1} parent=5 // pred_fallthru
        _
      %p497 = scmp.le.s32.totalorder 1, %s32
      %p498 = scmp.lt.s32.totalorder %s32, 5
      %p499 = pnand %p497, %p498
      %p500 = pneg %p499
      // Predicated region
      $region65: #{multi_head_attention.1} parent=5 // pred_check
        _
      $region66: #{multi_head_attention.1} parent=5 // pred_check_branch
        %502 = sbr.rel (%p499) target = $region68
      $region67: #{multi_head_attention.1} parent=5 // pred_region
        %s503 = ssub.s32 %s32, 1
        %s504 = sand.u32 %s45, 1
        %s505 = scalar_lea.sflag [#allocation3], %s504
        %s506 = sand.u32 %s45, 1
        %s507 = smul.addr %s506, 16
        %s508 = scalar_lea.vmem [#allocation2], %s507
        // Predicated region
        $region69: #{multi_head_attention.1} parent=67 // pred_check
          %p509 = pneg %p58
        $region70: #{multi_head_attention.1} parent=67 // pred_check_branch
          %511 = sbr.rel (%p509) target = $region72
        $region71: #{multi_head_attention.1} parent=67 // pred_region
          %512 = dma.done %s505, 256
        $region72: #{multi_head_attention.1} parent=67 // pred_fallthru
          _
        %s513 = sand.u32 %s37, 1
        %s514 = scalar_lea.sflag [#allocation6], %s513
        %s515 = sand.u32 %s71, 1
        %s516 = smul.addr %s515, 16
        %s517 = scalar_lea.vmem [#allocation5], %s516
        // Predicated region
        $region73: #{multi_head_attention.1} parent=67 // pred_check
          %p518 = pneg %p84
        $region74: #{multi_head_attention.1} parent=67 // pred_check_branch
          %520 = sbr.rel (%p518) target = $region76
        $region75: #{multi_head_attention.1} parent=67 // pred_region
          %521 = dma.done %s514, 256
        $region76: #{multi_head_attention.1} parent=67 // pred_fallthru
          _
        %s522 = sand.u32 %s37, 1
        %s523 = scalar_lea.sflag [#allocation6], %s522
        %s524 = sand.u32 %s97, 1
        %s525 = smul.addr %s524, 16
        %s526 = scalar_lea.vmem [#allocation7], %s525
        // Predicated region
        $region77: #{multi_head_attention.1} parent=67 // pred_check
          %p527 = pneg %p110
        $region78: #{multi_head_attention.1} parent=67 // pred_check_branch
          %529 = sbr.rel (%p527) target = $region80
        $region79: #{multi_head_attention.1} parent=67 // pred_region
          %530 = dma.done %s523, 256
        $region80: #{multi_head_attention.1} parent=67 // pred_fallthru
          _
        %s531 = sand.u32 %s37, 1
        %s532 = scalar_lea.sflag [#allocation9], %s531
        %s533 = sand.u32 %s123, 1
        %s534 = smul.addr %s533, 16
        %s535 = scalar_lea.vmem [#allocation8], %s534
        // Predicated region
        $region81: #{multi_head_attention.1} parent=67 // pred_check
          %p536 = pneg %p136
        $region82: #{multi_head_attention.1} parent=67 // pred_check_branch
          %538 = sbr.rel (%p536) target = $region84
        $region83: #{multi_head_attention.1} parent=67 // pred_region
          %539 = dma.done %s532, 256
        $region84: #{multi_head_attention.1} parent=67 // pred_fallthru
          _
        // Predicated region
        $region85: #{multi_head_attention.1} parent=67 // pred_check
          %p540 = pneg %p157
        $region86: #{multi_head_attention.1} parent=67 // pred_check_branch
          %542 = sbr.rel (%p540) target = $region88
        $region87: #{multi_head_attention.1} parent=67 // pred_region
          %543 = dma.done [#allocation9], 2048
        $region88: #{multi_head_attention.1} parent=67 // pred_fallthru
          _
        // Predicated region
        $region89: #{multi_head_attention.1} parent=67 // pred_check
          %p544 = pneg %p199
        $region90: #{multi_head_attention.1} parent=67 // pred_check_branch
          %546 = sbr.rel (%p544) target = $region92
        $region91: #{multi_head_attention.1} parent=67 // pred_region
          %547 = dma.done [#allocation12], 2048
        $region92: #{multi_head_attention.1} parent=67 // pred_fallthru
          _
        // Predicated region
        $region93: #{multi_head_attention.1} parent=67 // pred_check
          %p548 = pneg %p241
        $region94: #{multi_head_attention.1} parent=67 // pred_check_branch
          %550 = sbr.rel (%p548) target = $region96
        $region95: #{multi_head_attention.1} parent=67 // pred_region
          %551 = dma.done [#allocation12], 2048
        $region96: #{multi_head_attention.1} parent=67 // pred_fallthru
          _
        // Predicated region
        $region97: #{multi_head_attention.1} parent=67 // pred_check
          %p552 = pneg %p283
        $region98: #{multi_head_attention.1} parent=67 // pred_check_branch
          %554 = sbr.rel (%p552) target = $region100
        $region99: #{multi_head_attention.1} parent=67 // pred_region
          %555 = dma.done [#allocation15], 2048
        $region100: #{multi_head_attention.1} parent=67 // pred_fallthru
          _
        %s556 = sand.u32 %s45, 1
        %s557 = scalar_lea.sflag [#allocation3], %s556
        %s558 = sand.u32 %s45, 1
        %s559 = smul.addr %s558, 16
        %s560 = scalar_lea.vmem [#allocation2], %s559
        %p561 = pneg %p58
        %p562 = pneg %p55
        %s563 = sand.u32 %s37, 1
        %s564 = scalar_lea.sflag [#allocation6], %s563
        %s565 = sand.u32 %s71, 1
        %s566 = smul.addr %s565, 16
        %s567 = scalar_lea.vmem [#allocation5], %s566
        %p568 = pneg %p84
        %p569 = pneg %p81
        %s570 = sand.u32 %s37, 1
        %s571 = scalar_lea.sflag [#allocation6], %s570
        %s572 = sand.u32 %s97, 1
        %s573 = smul.addr %s572, 16
        %s574 = scalar_lea.vmem [#allocation7], %s573
        %p575 = pneg %p110
        %p576 = pneg %p107
        %s577 = sand.u32 %s37, 1
        %s578 = scalar_lea.sflag [#allocation9], %s577
        %s579 = sand.u32 %s123, 1
        %s580 = smul.addr %s579, 16
        %s581 = scalar_lea.vmem [#allocation8], %s580
        %p582 = pneg %p136
        %p583 = pneg %p133
        %p584 = pneg %p157
        %p585 = pneg %p154
        %p586 = pneg %p178
        %p587 = pneg %p175
        %p588 = pneg %p199
        %p589 = pneg %p196
        %p590 = pneg %p220
        %p591 = pneg %p217
        %p592 = pneg %p241
        %p593 = pneg %p238
        %p594 = pneg %p262
        %p595 = pneg %p259
        %p596 = pneg %p283
        %p597 = pneg %p280
        %p598 = pneg %p304
        %p599 = pneg %p301
        %p600 = pneg %p330
        %p601 = pneg %p327
        %s602 = sand.u32 %s317, 1
        %s603 = scalar_lea.sflag [#allocation4], %s602
        %s604 = sand.u32 %s317, 1
        %s605 = smul.addr %s604, 16
        %s606 = scalar_lea.vmem [#allocation16], %s605
        %v607 = vld [vmem:[%s508] sm:$0xff]
        %v608 = vld [vmem:[%s508 + $0x8] sm:$0xff]
        %v609 = vld [vmem:[%s517] sm:$0xff]
        %v610 = vld [vmem:[%s517 + $0x8] sm:$0xff]
        %v611 = vld [vmem:[%s526] sm:$0xff]
        %v612 = vld [vmem:[%s526 + $0x8] sm:$0xff]
        %v613 = vld [vmem:[%s535] sm:$0xff]
        %v614 = vld [vmem:[%s535 + $0x8] sm:$0xff]
        %v615 = vld [vmem:[#allocation10] sm:$0xff]
        %v616 = vld [vmem:[#allocation10 + $0x8] sm:$0xff]
        %v617 = vld [vmem:[#allocation10 + $0x10] sm:$0xff]
        %v618 = vld [vmem:[#allocation10 + $0x18] sm:$0xff]
        %v619 = vld [vmem:[#allocation10 + $0x20] sm:$0xff]
        %v620 = vld [vmem:[#allocation10 + $0x28] sm:$0xff]
        %v621 = vld [vmem:[#allocation10 + $0x30] sm:$0xff]
        %v622 = vld [vmem:[#allocation10 + $0x38] sm:$0xff]
        %v623 = vld [vmem:[#allocation10 + $0x40] sm:$0xff]
        %v624 = vld [vmem:[#allocation10 + $0x48] sm:$0xff]
        %v625 = vld [vmem:[#allocation10 + $0x50] sm:$0xff]
        %v626 = vld [vmem:[#allocation10 + $0x58] sm:$0xff]
        %v627 = vld [vmem:[#allocation10 + $0x60] sm:$0xff]
        %v628 = vld [vmem:[#allocation10 + $0x68] sm:$0xff]
        %v629 = vld [vmem:[#allocation10 + $0x70] sm:$0xff]
        %v630 = vld [vmem:[#allocation10 + $0x78] sm:$0xff]
        %v631 = vld [vmem:[%s5] sm:$0x1]
        %v633 = vlaneseq
        %v634 = vshrl.u32 %v633, 7
        %v635 = vsub.s32 0, %v634
        %v636 = vrot.slane %v631, %v635
        %638 = vmatprep.subr.mxu0 0.0
        %639 = vmatpush1.msra.mxu0 %v615
        %640 = vmatprep.subr.mxu0 0.0
        %641 = vmatpush1.msra.mxu0 %v616
        %642 = vmatprep.subr.mxu0 0.0
        %643 = vmatpush1.msra.mxu0 %v617
        %644 = vmatprep.subr.mxu0 0.0
        %645 = vmatpush1.msra.mxu0 %v618
        %646 = vmatprep.subr.mxu0 0.0
        %647 = vmatpush1.msra.mxu0 %v619
        %648 = vmatprep.subr.mxu0 0.0
        %649 = vmatpush1.msra.mxu0 %v620
        %650 = vmatprep.subr.mxu0 0.0
        %651 = vmatpush1.msra.mxu0 %v621
        %652 = vmatprep.subr.mxu0 0.0
        %653 = vmatpush1.msra.mxu0 %v622
        %654 = vmatprep.subr.mxu0 0.0
        %655 = vmatpush1.msra.mxu0 %v623
        %656 = vmatprep.subr.mxu0 0.0
        %657 = vmatpush1.msra.mxu0 %v624
        %658 = vmatprep.subr.mxu0 0.0
        %659 = vmatpush1.msra.mxu0 %v625
        %660 = vmatprep.subr.mxu0 0.0
        %661 = vmatpush1.msra.mxu0 %v626
        %662 = vmatprep.subr.mxu0 0.0
        %663 = vmatpush1.msra.mxu0 %v627
        %664 = vmatprep.subr.mxu0 0.0
        %665 = vmatpush1.msra.mxu0 %v628
        %666 = vmatprep.subr.mxu0 0.0
        %667 = vmatpush1.msra.mxu0 %v629
        %668 = vmatprep.subr.mxu0 0.0
        %669 = vmatpush1.msra.mxu0 %v630
        %670 = vmatprep.subr.mxu0 0.0
        %671 = vmatpush1.msra.mxu0 0.0
        %672 = vmatprep.subr.mxu0 0.0
        %673 = vmatpush1.msra.mxu0 0.0
        %674 = vmatprep.subr.mxu0 0.0
        %675 = vmatpush1.msra.mxu0 0.0
        %676 = vmatprep.subr.mxu0 0.0
        %677 = vmatpush1.msra.mxu0 0.0
        %678 = vmatprep.subr.mxu0 0.0
        %679 = vmatpush1.msra.mxu0 0.0
        %680 = vmatprep.subr.mxu0 0.0
        %681 = vmatpush1.msra.mxu0 0.0
        %682 = vmatprep.subr.mxu0 0.0
        %683 = vmatpush1.msra.mxu0 0.0
        %684 = vmatprep.subr.mxu0 0.0
        %685 = vmatpush1.msra.mxu0 0.0
        %686 = vmatprep.subr.mxu0 0.0
        %687 = vmatpush1.msra.mxu0 0.0
        %688 = vmatprep.subr.mxu0 0.0
        %689 = vmatpush1.msra.mxu0 0.0
        %690 = vmatprep.subr.mxu0 0.0
        %691 = vmatpush1.msra.mxu0 0.0
        %692 = vmatprep.subr.mxu0 0.0
        %693 = vmatpush1.msra.mxu0 0.0
        %694 = vmatprep.subr.mxu0 0.0
        %695 = vmatpush1.msra.mxu0 0.0
        %696 = vmatprep.subr.mxu0 0.0
        %697 = vmatpush1.msra.mxu0 0.0
        %698 = vmatprep.subr.mxu0 0.0
        %699 = vmatpush1.msra.mxu0 0.0
        %700 = vmatprep.subr.mxu0 0.0
        %701 = vmatpush1.msra.mxu0 0.0
        %702 = vmatprep.mubr.f32.mxu0 0.0
        %703 = vmatmul.mubr.f32.gmra.mrb[0].mxu0 %v607
        %v704 = vpop.f32.mrb[0].mxu0
        %v705 = vadd.f32 %v636, %v704
        %v706 = vpop.f32.mrb[0].mxu0
        %707 = vmatprep.mubr.f32.mxu0 0.0
        %708 = vmatmul.mubr.f32.gmra.mrb[0].mxu0 %v608
        %v709 = vpop.f32.mrb[0].mxu0
        %v710 = vadd.f32 %v636, %v709
        %v711 = vpop.f32.mrb[0].mxu0
        %712 = vdwg.mxu0
        %v713 = vld [vmem:[#allocation11] sm:$0xff]
        %v714 = vld [vmem:[#allocation11 + $0x8] sm:$0xff]
        %v715 = vld [vmem:[#allocation11 + $0x10] sm:$0xff]
        %v716 = vld [vmem:[#allocation11 + $0x18] sm:$0xff]
        %v717 = vld [vmem:[#allocation11 + $0x20] sm:$0xff]
        %v718 = vld [vmem:[#allocation11 + $0x28] sm:$0xff]
        %v719 = vld [vmem:[#allocation11 + $0x30] sm:$0xff]
        %v720 = vld [vmem:[#allocation11 + $0x38] sm:$0xff]
        %v721 = vld [vmem:[#allocation11 + $0x40] sm:$0xff]
        %v722 = vld [vmem:[#allocation11 + $0x48] sm:$0xff]
        %v723 = vld [vmem:[#allocation11 + $0x50] sm:$0xff]
        %v724 = vld [vmem:[#allocation11 + $0x58] sm:$0xff]
        %v725 = vld [vmem:[#allocation11 + $0x60] sm:$0xff]
        %v726 = vld [vmem:[#allocation11 + $0x68] sm:$0xff]
        %v727 = vld [vmem:[#allocation11 + $0x70] sm:$0xff]
        %v728 = vld [vmem:[#allocation11 + $0x78] sm:$0xff]
        %v729 = vld [vmem:[%s7] sm:$0x1]
        %v731 = vlaneseq
        %v732 = vshrl.u32 %v731, 7
        %v733 = vsub.s32 0, %v732
        %v734 = vrot.slane %v729, %v733
        %736 = vmatprep.subr.mxu0 0.0
        %737 = vmatpush1.msra.mxu0 %v713
        %738 = vmatprep.subr.mxu0 0.0
        %739 = vmatpush1.msra.mxu0 %v714
        %740 = vmatprep.subr.mxu0 0.0
        %741 = vmatpush1.msra.mxu0 %v715
        %742 = vmatprep.subr.mxu0 0.0
        %743 = vmatpush1.msra.mxu0 %v716
        %744 = vmatprep.subr.mxu0 0.0
        %745 = vmatpush1.msra.mxu0 %v717
        %746 = vmatprep.subr.mxu0 0.0
        %747 = vmatpush1.msra.mxu0 %v718
        %748 = vmatprep.subr.mxu0 0.0
        %749 = vmatpush1.msra.mxu0 %v719
        %750 = vmatprep.subr.mxu0 0.0
        %751 = vmatpush1.msra.mxu0 %v720
        %752 = vmatprep.subr.mxu0 0.0
        %753 = vmatpush1.msra.mxu0 %v721
        %754 = vmatprep.subr.mxu0 0.0
        %755 = vmatpush1.msra.mxu0 %v722
        %756 = vmatprep.subr.mxu0 0.0
        %757 = vmatpush1.msra.mxu0 %v723
        %758 = vmatprep.subr.mxu0 0.0
        %759 = vmatpush1.msra.mxu0 %v724
        %760 = vmatprep.subr.mxu0 0.0
        %761 = vmatpush1.msra.mxu0 %v725
        %762 = vmatprep.subr.mxu0 0.0
        %763 = vmatpush1.msra.mxu0 %v726
        %764 = vmatprep.subr.mxu0 0.0
        %765 = vmatpush1.msra.mxu0 %v727
        %766 = vmatprep.subr.mxu0 0.0
        %767 = vmatpush1.msra.mxu0 %v728
        %768 = vmatprep.subr.mxu0 0.0
        %769 = vmatpush1.msra.mxu0 0.0
        %770 = vmatprep.subr.mxu0 0.0
        %771 = vmatpush1.msra.mxu0 0.0
        %772 = vmatprep.subr.mxu0 0.0
        %773 = vmatpush1.msra.mxu0 0.0
        %774 = vmatprep.subr.mxu0 0.0
        %775 = vmatpush1.msra.mxu0 0.0
        %776 = vmatprep.subr.mxu0 0.0
        %777 = vmatpush1.msra.mxu0 0.0
        %778 = vmatprep.subr.mxu0 0.0
        %779 = vmatpush1.msra.mxu0 0.0
        %780 = vmatprep.subr.mxu0 0.0
        %781 = vmatpush1.msra.mxu0 0.0
        %782 = vmatprep.subr.mxu0 0.0
        %783 = vmatpush1.msra.mxu0 0.0
        %784 = vmatprep.subr.mxu0 0.0
        %785 = vmatpush1.msra.mxu0 0.0
        %786 = vmatprep.subr.mxu0 0.0
        %787 = vmatpush1.msra.mxu0 0.0
        %788 = vmatprep.subr.mxu0 0.0
        %789 = vmatpush1.msra.mxu0 0.0
        %790 = vmatprep.subr.mxu0 0.0
        %791 = vmatpush1.msra.mxu0 0.0
        %792 = vmatprep.subr.mxu0 0.0
        %793 = vmatpush1.msra.mxu0 0.0
        %794 = vmatprep.subr.mxu0 0.0
        %795 = vmatpush1.msra.mxu0 0.0
        %796 = vmatprep.subr.mxu0 0.0
        %797 = vmatpush1.msra.mxu0 0.0
        %798 = vmatprep.subr.mxu0 0.0
        %799 = vmatpush1.msra.mxu0 0.0
        %800 = vmatprep.mubr.f32.mxu0 0.0
        %801 = vmatmul.mubr.f32.gmra.mrb[0].mxu0 %v609
        %v802 = vpop.f32.mrb[0].mxu0
        %v803 = vadd.f32 %v734, %v802
        %v804 = vpop.f32.mrb[0].mxu0
        %805 = vmatprep.mubr.f32.mxu0 0.0
        %806 = vmatmul.mubr.f32.gmra.mrb[0].mxu0 %v610
        %v807 = vpop.f32.mrb[0].mxu0
        %v808 = vadd.f32 %v734, %v807
        %v809 = vpop.f32.mrb[0].mxu0
        %810 = vdwg.mxu0
        %v811 = vld [vmem:[#allocation13] sm:$0xff]
        %v812 = vld [vmem:[#allocation13 + $0x8] sm:$0xff]
        %v813 = vld [vmem:[#allocation13 + $0x10] sm:$0xff]
        %v814 = vld [vmem:[#allocation13 + $0x18] sm:$0xff]
        %v815 = vld [vmem:[#allocation13 + $0x20] sm:$0xff]
        %v816 = vld [vmem:[#allocation13 + $0x28] sm:$0xff]
        %v817 = vld [vmem:[#allocation13 + $0x30] sm:$0xff]
        %v818 = vld [vmem:[#allocation13 + $0x38] sm:$0xff]
        %v819 = vld [vmem:[#allocation13 + $0x40] sm:$0xff]
        %v820 = vld [vmem:[#allocation13 + $0x48] sm:$0xff]
        %v821 = vld [vmem:[#allocation13 + $0x50] sm:$0xff]
        %v822 = vld [vmem:[#allocation13 + $0x58] sm:$0xff]
        %v823 = vld [vmem:[#allocation13 + $0x60] sm:$0xff]
        %v824 = vld [vmem:[#allocation13 + $0x68] sm:$0xff]
        %v825 = vld [vmem:[#allocation13 + $0x70] sm:$0xff]
        %v826 = vld [vmem:[#allocation13 + $0x78] sm:$0xff]
        %v827 = vld [vmem:[%s9] sm:$0x1]
        %v829 = vlaneseq
        %v830 = vshrl.u32 %v829, 7
        %v831 = vsub.s32 0, %v830
        %v832 = vrot.slane %v827, %v831
        %834 = vmatprep.subr.mxu0 0.0
        %835 = vmatpush1.msra.mxu0 %v811
        %836 = vmatprep.subr.mxu0 0.0
        %837 = vmatpush1.msra.mxu0 %v812
        %838 = vmatprep.subr.mxu0 0.0
        %839 = vmatpush1.msra.mxu0 %v813
        %840 = vmatprep.subr.mxu0 0.0
        %841 = vmatpush1.msra.mxu0 %v814
        %842 = vmatprep.subr.mxu0 0.0
        %843 = vmatpush1.msra.mxu0 %v815
        %844 = vmatprep.subr.mxu0 0.0
        %845 = vmatpush1.msra.mxu0 %v816
        %846 = vmatprep.subr.mxu0 0.0
        %847 = vmatpush1.msra.mxu0 %v817
        %848 = vmatprep.subr.mxu0 0.0
        %849 = vmatpush1.msra.mxu0 %v818
        %850 = vmatprep.subr.mxu0 0.0
        %851 = vmatpush1.msra.mxu0 %v819
        %852 = vmatprep.subr.mxu0 0.0
        %853 = vmatpush1.msra.mxu0 %v820
        %854 = vmatprep.subr.mxu0 0.0
        %855 = vmatpush1.msra.mxu0 %v821
        %856 = vmatprep.subr.mxu0 0.0
        %857 = vmatpush1.msra.mxu0 %v822
        %858 = vmatprep.subr.mxu0 0.0
        %859 = vmatpush1.msra.mxu0 %v823
        %860 = vmatprep.subr.mxu0 0.0
        %861 = vmatpush1.msra.mxu0 %v824
        %862 = vmatprep.subr.mxu0 0.0
        %863 = vmatpush1.msra.mxu0 %v825
        %864 = vmatprep.subr.mxu0 0.0
        %865 = vmatpush1.msra.mxu0 %v826
        %866 = vmatprep.subr.mxu0 0.0
        %867 = vmatpush1.msra.mxu0 0.0
        %868 = vmatprep.subr.mxu0 0.0
        %869 = vmatpush1.msra.mxu0 0.0
        %870 = vmatprep.subr.mxu0 0.0
        %871 = vmatpush1.msra.mxu0 0.0
        %872 = vmatprep.subr.mxu0 0.0
        %873 = vmatpush1.msra.mxu0 0.0
        %874 = vmatprep.subr.mxu0 0.0
        %875 = vmatpush1.msra.mxu0 0.0
        %876 = vmatprep.subr.mxu0 0.0
        %877 = vmatpush1.msra.mxu0 0.0
        %878 = vmatprep.subr.mxu0 0.0
        %879 = vmatpush1.msra.mxu0 0.0
        %880 = vmatprep.subr.mxu0 0.0
        %881 = vmatpush1.msra.mxu0 0.0
        %882 = vmatprep.subr.mxu0 0.0
        %883 = vmatpush1.msra.mxu0 0.0
        %884 = vmatprep.subr.mxu0 0.0
        %885 = vmatpush1.msra.mxu0 0.0
        %886 = vmatprep.subr.mxu0 0.0
        %887 = vmatpush1.msra.mxu0 0.0
        %888 = vmatprep.subr.mxu0 0.0
        %889 = vmatpush1.msra.mxu0 0.0
        %890 = vmatprep.subr.mxu0 0.0
        %891 = vmatpush1.msra.mxu0 0.0
        %892 = vmatprep.subr.mxu0 0.0
        %893 = vmatpush1.msra.mxu0 0.0
        %894 = vmatprep.subr.mxu0 0.0
        %895 = vmatpush1.msra.mxu0 0.0
        %896 = vmatprep.subr.mxu0 0.0
        %897 = vmatpush1.msra.mxu0 0.0
        %898 = vmatprep.mubr.f32.mxu0 0.0
        %899 = vmatmul.mubr.f32.gmra.mrb[0].mxu0 %v611
        %v900 = vpop.f32.mrb[0].mxu0
        %v901 = vadd.f32 %v832, %v900
        %v902 = vpop.f32.mrb[0].mxu0
        %903 = vmatprep.mubr.f32.mxu0 0.0
        %904 = vmatmul.mubr.f32.gmra.mrb[0].mxu0 %v612
        %v905 = vpop.f32.mrb[0].mxu0
        %v906 = vadd.f32 %v832, %v905
        %v907 = vpop.f32.mrb[0].mxu0
        %908 = vdwg.mxu0
        %911 = vrot.lane.b32.xlu0 %v705, 96
        %v912 = vpop.permute.xlu0 %911
        %913 = vrot.lane.b32.xlu0 %v710, 96
        %v914 = vpop.permute.xlu0 %913
        %917 = vrot.lane.b32.xlu0 %v705, 64
        %v918 = vpop.permute.xlu0 %917
        %919 = vrot.lane.b32.xlu0 %v710, 64
        %v920 = vpop.permute.xlu0 %919
        %923 = vrot.lane.b32.xlu0 %v705, 32
        %v924 = vpop.permute.xlu0 %923
        %925 = vrot.lane.b32.xlu0 %v710, 32
        %v926 = vpop.permute.xlu0 %925
        %v929 = vcombine.low %v705, %v918
        %v930 = vcombine.high %v705, %v918
        %v932 = vunpack.c.l.s4 1983009808
        %v933 = vunpack.c.0.s8 %v932
        %v934 = vlaneseq
        %v935 = vshrl.u32 %v934, 7
        %v936 = vsub.s32 %v933, %v935
        %v937 = vrot.slane %v929, %v936
        %v939 = vunpack.c.l.s4 1983009808
        %v940 = vunpack.c.0.s8 %v939
        %v941 = vlaneseq
        %v942 = vshrl.u32 %v941, 7
        %v943 = vsub.s32 %v940, %v942
        %v944 = vrot.slane %v930, %v943
        %v945 = vcombine.low %v912, %v924
        %v946 = vcombine.high %v912, %v924
        %v948 = vunpack.c.l.s4 1983009808
        %v949 = vunpack.c.0.s8 %v948
        %v950 = vlaneseq
        %v951 = vshrl.u32 %v950, 7
        %v952 = vsub.s32 %v949, %v951
        %v953 = vrot.slane %v945, %v952
        %v955 = vunpack.c.l.s4 1983009808
        %v956 = vunpack.c.0.s8 %v955
        %v957 = vlaneseq
        %v958 = vshrl.u32 %v957, 7
        %v959 = vsub.s32 %v956, %v958
        %v960 = vrot.slane %v946, %v959
        %v961 = vcombine.low %v937, %v953
        %v962 = vcombine.high %v937, %v953
        %v964 = vunpack.c.l.s4 1934713408
        %v965 = vunpack.c.0.s8 %v964
        %v966 = vlaneseq
        %v967 = vshrl.u32 %v966, 7
        %v968 = vsub.s32 %v965, %v967
        %v969 = vrot.slane %v961, %v968
        %v971 = vunpack.c.l.s4 1934713408
        %v972 = vunpack.c.0.s8 %v971
        %v973 = vlaneseq
        %v974 = vshrl.u32 %v973, 7
        %v975 = vsub.s32 %v972, %v974
        %v976 = vrot.slane %v962, %v975
        %v977 = vcombine.low %v944, %v960
        %v978 = vcombine.high %v944, %v960
        %v980 = vunpack.c.l.s4 1934713408
        %v981 = vunpack.c.0.s8 %v980
        %v982 = vlaneseq
        %v983 = vshrl.u32 %v982, 7
        %v984 = vsub.s32 %v981, %v983
        %v985 = vrot.slane %v977, %v984
        %v987 = vunpack.c.l.s4 1934713408
        %v988 = vunpack.c.0.s8 %v987
        %v989 = vlaneseq
        %v990 = vshrl.u32 %v989, 7
        %v991 = vsub.s32 %v988, %v990
        %v992 = vrot.slane %v978, %v991
        %v993 = vcombine.high %v969, 0.0
        %v994 = vcombine.high %v976, 0.0
        %v995 = vcombine.high %v985, 0.0
        %v996 = vcombine.high %v992, 0.0
        %v997 = vcombine.low %v710, %v920
        %v998 = vcombine.high %v710, %v920
        %v1000 = vunpack.c.l.s4 1983009808
        %v1001 = vunpack.c.0.s8 %v1000
        %v1002 = vlaneseq
        %v1003 = vshrl.u32 %v1002, 7
        %v1004 = vsub.s32 %v1001, %v1003
        %v1005 = vrot.slane %v997, %v1004
        %v1007 = vunpack.c.l.s4 1983009808
        %v1008 = vunpack.c.0.s8 %v1007
        %v1009 = vlaneseq
        %v1010 = vshrl.u32 %v1009, 7
        %v1011 = vsub.s32 %v1008, %v1010
        %v1012 = vrot.slane %v998, %v1011
        %v1013 = vcombine.low %v914, %v926
        %v1014 = vcombine.high %v914, %v926
        %v1016 = vunpack.c.l.s4 1983009808
        %v1017 = vunpack.c.0.s8 %v1016
        %v1018 = vlaneseq
        %v1019 = vshrl.u32 %v1018, 7
        %v1020 = vsub.s32 %v1017, %v1019
        %v1021 = vrot.slane %v1013, %v1020
        %v1023 = vunpack.c.l.s4 1983009808
        %v1024 = vunpack.c.0.s8 %v1023
        %v1025 = vlaneseq
        %v1026 = vshrl.u32 %v1025, 7
        %v1027 = vsub.s32 %v1024, %v1026
        %v1028 = vrot.slane %v1014, %v1027
        %v1029 = vcombine.low %v1005, %v1021
        %v1030 = vcombine.high %v1005, %v1021
        %v1032 = vunpack.c.l.s4 1934713408
        %v1033 = vunpack.c.0.s8 %v1032
        %v1034 = vlaneseq
        %v1035 = vshrl.u32 %v1034, 7
        %v1036 = vsub.s32 %v1033, %v1035
        %v1037 = vrot.slane %v1029, %v1036
        %v1039 = vunpack.c.l.s4 1934713408
        %v1040 = vunpack.c.0.s8 %v1039
        %v1041 = vlaneseq
        %v1042 = vshrl.u32 %v1041, 7
        %v1043 = vsub.s32 %v1040, %v1042
        %v1044 = vrot.slane %v1030, %v1043
        %v1045 = vcombine.low %v1012, %v1028
        %v1046 = vcombine.high %v1012, %v1028
        %v1048 = vunpack.c.l.s4 1934713408
        %v1049 = vunpack.c.0.s8 %v1048
        %v1050 = vlaneseq
        %v1051 = vshrl.u32 %v1050, 7
        %v1052 = vsub.s32 %v1049, %v1051
        %v1053 = vrot.slane %v1045, %v1052
        %v1055 = vunpack.c.l.s4 1934713408
        %v1056 = vunpack.c.0.s8 %v1055
        %v1057 = vlaneseq
        %v1058 = vshrl.u32 %v1057, 7
        %v1059 = vsub.s32 %v1056, %v1058
        %v1060 = vrot.slane %v1046, %v1059
        %v1061 = vcombine.high %v1037, 0.0
        %v1062 = vcombine.high %v1044, 0.0
        %v1063 = vcombine.high %v1053, 0.0
        %v1064 = vcombine.high %v1060, 0.0
        %v1065 = vcombine.low %v969, %v976
        %v1067 = vunpack.c.l.s4 1983009808
        %v1068 = vunpack.c.0.s8 %v1067
        %v1069 = vlaneseq
        %v1070 = vshrl.u32 %v1069, 7
        %v1071 = vsub.s32 %v1068, %v1070
        %v1072 = vrot.slane %v1065, %v1071
        %v1073 = vcombine.low %v993, %v994
        %v1075 = vunpack.c.l.s4 1983009808
        %v1076 = vunpack.c.0.s8 %v1075
        %v1077 = vlaneseq
        %v1078 = vshrl.u32 %v1077, 7
        %v1079 = vsub.s32 %v1076, %v1078
        %v1080 = vrot.slane %v1073, %v1079
        %v1081 = vcombine.low %v985, %v992
        %v1083 = vunpack.c.l.s4 1983009808
        %v1084 = vunpack.c.0.s8 %v1083
        %v1085 = vlaneseq
        %v1086 = vshrl.u32 %v1085, 7
        %v1087 = vsub.s32 %v1084, %v1086
        %v1088 = vrot.slane %v1081, %v1087
        %v1089 = vcombine.low %v995, %v996
        %v1091 = vunpack.c.l.s4 1983009808
        %v1092 = vunpack.c.0.s8 %v1091
        %v1093 = vlaneseq
        %v1094 = vshrl.u32 %v1093, 7
        %v1095 = vsub.s32 %v1092, %v1094
        %v1096 = vrot.slane %v1089, %v1095
        %v1097 = vcombine.low %v1072, %v1080
        %v1098 = vcombine.high %v1072, %v1080
        %v1100 = vunpack.c.l.s4 1934713408
        %v1101 = vunpack.c.0.s8 %v1100
        %v1102 = vlaneseq
        %v1103 = vshrl.u32 %v1102, 7
        %v1104 = vsub.s32 %v1101, %v1103
        %v1105 = vrot.slane %v1097, %v1104
        %v1107 = vunpack.c.l.s4 1934713408
        %v1108 = vunpack.c.0.s8 %v1107
        %v1109 = vlaneseq
        %v1110 = vshrl.u32 %v1109, 7
        %v1111 = vsub.s32 %v1108, %v1110
        %v1112 = vrot.slane %v1098, %v1111
        %v1113 = vcombine.low %v1088, %v1096
        %v1114 = vcombine.high %v1088, %v1096
        %v1116 = vunpack.c.l.s4 1934713408
        %v1117 = vunpack.c.0.s8 %v1116
        %v1118 = vlaneseq
        %v1119 = vshrl.u32 %v1118, 7
        %v1120 = vsub.s32 %v1117, %v1119
        %v1121 = vrot.slane %v1113, %v1120
        %v1123 = vunpack.c.l.s4 1934713408
        %v1124 = vunpack.c.0.s8 %v1123
        %v1125 = vlaneseq
        %v1126 = vshrl.u32 %v1125, 7
        %v1127 = vsub.s32 %v1124, %v1126
        %v1128 = vrot.slane %v1114, %v1127
        %v1129 = vcombine.low %v1105, %v1121
        %v1130 = vcombine.high %v1105, %v1121
        %v1131 = vcombine.low %v1112, %v1128
        %v1132 = vcombine.high %v1112, %v1128
        %v1133 = vcombine.low %v1037, %v1044
        %v1135 = vunpack.c.l.s4 1983009808
        %v1136 = vunpack.c.0.s8 %v1135
        %v1137 = vlaneseq
        %v1138 = vshrl.u32 %v1137, 7
        %v1139 = vsub.s32 %v1136, %v1138
        %v1140 = vrot.slane %v1133, %v1139
        %v1141 = vcombine.low %v1061, %v1062
        %v1143 = vunpack.c.l.s4 1983009808
        %v1144 = vunpack.c.0.s8 %v1143
        %v1145 = vlaneseq
        %v1146 = vshrl.u32 %v1145, 7
        %v1147 = vsub.s32 %v1144, %v1146
        %v1148 = vrot.slane %v1141, %v1147
        %v1149 = vcombine.low %v1053, %v1060
        %v1151 = vunpack.c.l.s4 1983009808
        %v1152 = vunpack.c.0.s8 %v1151
        %v1153 = vlaneseq
        %v1154 = vshrl.u32 %v1153, 7
        %v1155 = vsub.s32 %v1152, %v1154
        %v1156 = vrot.slane %v1149, %v1155
        %v1157 = vcombine.low %v1063, %v1064
        %v1159 = vunpack.c.l.s4 1983009808
        %v1160 = vunpack.c.0.s8 %v1159
        %v1161 = vlaneseq
        %v1162 = vshrl.u32 %v1161, 7
        %v1163 = vsub.s32 %v1160, %v1162
        %v1164 = vrot.slane %v1157, %v1163
        %v1165 = vcombine.low %v1140, %v1148
        %v1166 = vcombine.high %v1140, %v1148
        %v1168 = vunpack.c.l.s4 1934713408
        %v1169 = vunpack.c.0.s8 %v1168
        %v1170 = vlaneseq
        %v1171 = vshrl.u32 %v1170, 7
        %v1172 = vsub.s32 %v1169, %v1171
        %v1173 = vrot.slane %v1165, %v1172
        %v1175 = vunpack.c.l.s4 1934713408
        %v1176 = vunpack.c.0.s8 %v1175
        %v1177 = vlaneseq
        %v1178 = vshrl.u32 %v1177, 7
        %v1179 = vsub.s32 %v1176, %v1178
        %v1180 = vrot.slane %v1166, %v1179
        %v1181 = vcombine.low %v1156, %v1164
        %v1182 = vcombine.high %v1156, %v1164
        %v1184 = vunpack.c.l.s4 1934713408
        %v1185 = vunpack.c.0.s8 %v1184
        %v1186 = vlaneseq
        %v1187 = vshrl.u32 %v1186, 7
        %v1188 = vsub.s32 %v1185, %v1187
        %v1189 = vrot.slane %v1181, %v1188
        %v1191 = vunpack.c.l.s4 1934713408
        %v1192 = vunpack.c.0.s8 %v1191
        %v1193 = vlaneseq
        %v1194 = vshrl.u32 %v1193, 7
        %v1195 = vsub.s32 %v1192, %v1194
        %v1196 = vrot.slane %v1182, %v1195
        %v1197 = vcombine.low %v1173, %v1189
        %v1198 = vcombine.high %v1173, %v1189
        %v1199 = vcombine.low %v1180, %v1196
        %v1200 = vcombine.high %v1180, %v1196
        %1203 = vrot.lane.b32.xlu0 %v803, 96
        %v1204 = vpop.permute.xlu0 %1203
        %1205 = vrot.lane.b32.xlu0 %v808, 96
        %v1206 = vpop.permute.xlu0 %1205
        %1209 = vrot.lane.b32.xlu0 %v803, 64
        %v1210 = vpop.permute.xlu0 %1209
        %1211 = vrot.lane.b32.xlu0 %v808, 64
        %v1212 = vpop.permute.xlu0 %1211
        %1215 = vrot.lane.b32.xlu0 %v803, 32
        %v1216 = vpop.permute.xlu0 %1215
        %1217 = vrot.lane.b32.xlu0 %v808, 32
        %v1218 = vpop.permute.xlu0 %1217
        %v1221 = vcombine.low %v803, %v1210
        %v1222 = vcombine.high %v803, %v1210
        %v1224 = vunpack.c.l.s4 1983009808
        %v1225 = vunpack.c.0.s8 %v1224
        %v1226 = vlaneseq
        %v1227 = vshrl.u32 %v1226, 7
        %v1228 = vsub.s32 %v1225, %v1227
        %v1229 = vrot.slane %v1221, %v1228
        %v1231 = vunpack.c.l.s4 1983009808
        %v1232 = vunpack.c.0.s8 %v1231
        %v1233 = vlaneseq
        %v1234 = vshrl.u32 %v1233, 7
        %v1235 = vsub.s32 %v1232, %v1234
        %v1236 = vrot.slane %v1222, %v1235
        %v1237 = vcombine.low %v1204, %v1216
        %v1238 = vcombine.high %v1204, %v1216
        %v1240 = vunpack.c.l.s4 1983009808
        %v1241 = vunpack.c.0.s8 %v1240
        %v1242 = vlaneseq
        %v1243 = vshrl.u32 %v1242, 7
        %v1244 = vsub.s32 %v1241, %v1243
        %v1245 = vrot.slane %v1237, %v1244
        %v1247 = vunpack.c.l.s4 1983009808
        %v1248 = vunpack.c.0.s8 %v1247
        %v1249 = vlaneseq
        %v1250 = vshrl.u32 %v1249, 7
        %v1251 = vsub.s32 %v1248, %v1250
        %v1252 = vrot.slane %v1238, %v1251
        %v1253 = vcombine.low %v1229, %v1245
        %v1254 = vcombine.high %v1229, %v1245
        %v1256 = vunpack.c.l.s4 1934713408
        %v1257 = vunpack.c.0.s8 %v1256
        %v1258 = vlaneseq
        %v1259 = vshrl.u32 %v1258, 7
        %v1260 = vsub.s32 %v1257, %v1259
        %v1261 = vrot.slane %v1253, %v1260
        %v1263 = vunpack.c.l.s4 1934713408
        %v1264 = vunpack.c.0.s8 %v1263
        %v1265 = vlaneseq
        %v1266 = vshrl.u32 %v1265, 7
        %v1267 = vsub.s32 %v1264, %v1266
        %v1268 = vrot.slane %v1254, %v1267
        %v1269 = vcombine.low %v1236, %v1252
        %v1270 = vcombine.high %v1236, %v1252
        %v1272 = vunpack.c.l.s4 1934713408
        %v1273 = vunpack.c.0.s8 %v1272
        %v1274 = vlaneseq
        %v1275 = vshrl.u32 %v1274, 7
        %v1276 = vsub.s32 %v1273, %v1275
        %v1277 = vrot.slane %v1269, %v1276
        %v1279 = vunpack.c.l.s4 1934713408
        %v1280 = vunpack.c.0.s8 %v1279
        %v1281 = vlaneseq
        %v1282 = vshrl.u32 %v1281, 7
        %v1283 = vsub.s32 %v1280, %v1282
        %v1284 = vrot.slane %v1270, %v1283
        %v1285 = vcombine.high %v1261, 0.0
        %v1286 = vcombine.high %v1268, 0.0
        %v1287 = vcombine.high %v1277, 0.0
        %v1288 = vcombine.high %v1284, 0.0
        %v1289 = vcombine.low %v808, %v1212
        %v1290 = vcombine.high %v808, %v1212
        %v1292 = vunpack.c.l.s4 1983009808
        %v1293 = vunpack.c.0.s8 %v1292
        %v1294 = vlaneseq
        %v1295 = vshrl.u32 %v1294, 7
        %v1296 = vsub.s32 %v1293, %v1295
        %v1297 = vrot.slane %v1289, %v1296
        %v1299 = vunpack.c.l.s4 1983009808
        %v1300 = vunpack.c.0.s8 %v1299
        %v1301 = vlaneseq
        %v1302 = vshrl.u32 %v1301, 7
        %v1303 = vsub.s32 %v1300, %v1302
        %v1304 = vrot.slane %v1290, %v1303
        %v1305 = vcombine.low %v1206, %v1218
        %v1306 = vcombine.high %v1206, %v1218
        %v1308 = vunpack.c.l.s4 1983009808
        %v1309 = vunpack.c.0.s8 %v1308
        %v1310 = vlaneseq
        %v1311 = vshrl.u32 %v1310, 7
        %v1312 = vsub.s32 %v1309, %v1311
        %v1313 = vrot.slane %v1305, %v1312
        %v1315 = vunpack.c.l.s4 1983009808
        %v1316 = vunpack.c.0.s8 %v1315
        %v1317 = vlaneseq
        %v1318 = vshrl.u32 %v1317, 7
        %v1319 = vsub.s32 %v1316, %v1318
        %v1320 = vrot.slane %v1306, %v1319
        %v1321 = vcombine.low %v1297, %v1313
        %v1322 = vcombine.high %v1297, %v1313
        %v1324 = vunpack.c.l.s4 1934713408
        %v1325 = vunpack.c.0.s8 %v1324
        %v1326 = vlaneseq
        %v1327 = vshrl.u32 %v1326, 7
        %v1328 = vsub.s32 %v1325, %v1327
        %v1329 = vrot.slane %v1321, %v1328
        %v1331 = vunpack.c.l.s4 1934713408
        %v1332 = vunpack.c.0.s8 %v1331
        %v1333 = vlaneseq
        %v1334 = vshrl.u32 %v1333, 7
        %v1335 = vsub.s32 %v1332, %v1334
        %v1336 = vrot.slane %v1322, %v1335
        %v1337 = vcombine.low %v1304, %v1320
        %v1338 = vcombine.high %v1304, %v1320
        %v1340 = vunpack.c.l.s4 1934713408
        %v1341 = vunpack.c.0.s8 %v1340
        %v1342 = vlaneseq
        %v1343 = vshrl.u32 %v1342, 7
        %v1344 = vsub.s32 %v1341, %v1343
        %v1345 = vrot.slane %v1337, %v1344
        %v1347 = vunpack.c.l.s4 1934713408
        %v1348 = vunpack.c.0.s8 %v1347
        %v1349 = vlaneseq
        %v1350 = vshrl.u32 %v1349, 7
        %v1351 = vsub.s32 %v1348, %v1350
        %v1352 = vrot.slane %v1338, %v1351
        %v1353 = vcombine.high %v1329, 0.0
        %v1354 = vcombine.high %v1336, 0.0
        %v1355 = vcombine.high %v1345, 0.0
        %v1356 = vcombine.high %v1352, 0.0
        %v1357 = vcombine.low %v1261, %v1268
        %v1359 = vunpack.c.l.s4 1983009808
        %v1360 = vunpack.c.0.s8 %v1359
        %v1361 = vlaneseq
        %v1362 = vshrl.u32 %v1361, 7
        %v1363 = vsub.s32 %v1360, %v1362
        %v1364 = vrot.slane %v1357, %v1363
        %v1365 = vcombine.low %v1285, %v1286
        %v1367 = vunpack.c.l.s4 1983009808
        %v1368 = vunpack.c.0.s8 %v1367
        %v1369 = vlaneseq
        %v1370 = vshrl.u32 %v1369, 7
        %v1371 = vsub.s32 %v1368, %v1370
        %v1372 = vrot.slane %v1365, %v1371
        %v1373 = vcombine.low %v1277, %v1284
        %v1375 = vunpack.c.l.s4 1983009808
        %v1376 = vunpack.c.0.s8 %v1375
        %v1377 = vlaneseq
        %v1378 = vshrl.u32 %v1377, 7
        %v1379 = vsub.s32 %v1376, %v1378
        %v1380 = vrot.slane %v1373, %v1379
        %v1381 = vcombine.low %v1287, %v1288
        %v1383 = vunpack.c.l.s4 1983009808
        %v1384 = vunpack.c.0.s8 %v1383
        %v1385 = vlaneseq
        %v1386 = vshrl.u32 %v1385, 7
        %v1387 = vsub.s32 %v1384, %v1386
        %v1388 = vrot.slane %v1381, %v1387
        %v1389 = vcombine.low %v1364, %v1372
        %v1390 = vcombine.high %v1364, %v1372
        %v1392 = vunpack.c.l.s4 1934713408
        %v1393 = vunpack.c.0.s8 %v1392
        %v1394 = vlaneseq
        %v1395 = vshrl.u32 %v1394, 7
        %v1396 = vsub.s32 %v1393, %v1395
        %v1397 = vrot.slane %v1389, %v1396
        %v1399 = vunpack.c.l.s4 1934713408
        %v1400 = vunpack.c.0.s8 %v1399
        %v1401 = vlaneseq
        %v1402 = vshrl.u32 %v1401, 7
        %v1403 = vsub.s32 %v1400, %v1402
        %v1404 = vrot.slane %v1390, %v1403
        %v1405 = vcombine.low %v1380, %v1388
        %v1406 = vcombine.high %v1380, %v1388
        %v1408 = vunpack.c.l.s4 1934713408
        %v1409 = vunpack.c.0.s8 %v1408
        %v1410 = vlaneseq
        %v1411 = vshrl.u32 %v1410, 7
        %v1412 = vsub.s32 %v1409, %v1411
        %v1413 = vrot.slane %v1405, %v1412
        %v1415 = vunpack.c.l.s4 1934713408
        %v1416 = vunpack.c.0.s8 %v1415
        %v1417 = vlaneseq
        %v1418 = vshrl.u32 %v1417, 7
        %v1419 = vsub.s32 %v1416, %v1418
        %v1420 = vrot.slane %v1406, %v1419
        %v1421 = vcombine.low %v1397, %v1413
        %v1422 = vcombine.high %v1397, %v1413
        %v1423 = vcombine.low %v1404, %v1420
        %v1424 = vcombine.high %v1404, %v1420
        %v1425 = vcombine.low %v1329, %v1336
        %v1427 = vunpack.c.l.s4 1983009808
        %v1428 = vunpack.c.0.s8 %v1427
        %v1429 = vlaneseq
        %v1430 = vshrl.u32 %v1429, 7
        %v1431 = vsub.s32 %v1428, %v1430
        %v1432 = vrot.slane %v1425, %v1431
        %v1433 = vcombine.low %v1353, %v1354
        %v1435 = vunpack.c.l.s4 1983009808
        %v1436 = vunpack.c.0.s8 %v1435
        %v1437 = vlaneseq
        %v1438 = vshrl.u32 %v1437, 7
        %v1439 = vsub.s32 %v1436, %v1438
        %v1440 = vrot.slane %v1433, %v1439
        %v1441 = vcombine.low %v1345, %v1352
        %v1443 = vunpack.c.l.s4 1983009808
        %v1444 = vunpack.c.0.s8 %v1443
        %v1445 = vlaneseq
        %v1446 = vshrl.u32 %v1445, 7
        %v1447 = vsub.s32 %v1444, %v1446
        %v1448 = vrot.slane %v1441, %v1447
        %v1449 = vcombine.low %v1355, %v1356
        %v1451 = vunpack.c.l.s4 1983009808
        %v1452 = vunpack.c.0.s8 %v1451
        %v1453 = vlaneseq
        %v1454 = vshrl.u32 %v1453, 7
        %v1455 = vsub.s32 %v1452, %v1454
        %v1456 = vrot.slane %v1449, %v1455
        %v1457 = vcombine.low %v1432, %v1440
        %v1458 = vcombine.high %v1432, %v1440
        %v1460 = vunpack.c.l.s4 1934713408
        %v1461 = vunpack.c.0.s8 %v1460
        %v1462 = vlaneseq
        %v1463 = vshrl.u32 %v1462, 7
        %v1464 = vsub.s32 %v1461, %v1463
        %v1465 = vrot.slane %v1457, %v1464
        %v1467 = vunpack.c.l.s4 1934713408
        %v1468 = vunpack.c.0.s8 %v1467
        %v1469 = vlaneseq
        %v1470 = vshrl.u32 %v1469, 7
        %v1471 = vsub.s32 %v1468, %v1470
        %v1472 = vrot.slane %v1458, %v1471
        %v1473 = vcombine.low %v1448, %v1456
        %v1474 = vcombine.high %v1448, %v1456
        %v1476 = vunpack.c.l.s4 1934713408
        %v1477 = vunpack.c.0.s8 %v1476
        %v1478 = vlaneseq
        %v1479 = vshrl.u32 %v1478, 7
        %v1480 = vsub.s32 %v1477, %v1479
        %v1481 = vrot.slane %v1473, %v1480
        %v1483 = vunpack.c.l.s4 1934713408
        %v1484 = vunpack.c.0.s8 %v1483
        %v1485 = vlaneseq
        %v1486 = vshrl.u32 %v1485, 7
        %v1487 = vsub.s32 %v1484, %v1486
        %v1488 = vrot.slane %v1474, %v1487
        %v1489 = vcombine.low %v1465, %v1481
        %v1490 = vcombine.high %v1465, %v1481
        %v1491 = vcombine.low %v1472, %v1488
        %v1492 = vcombine.high %v1472, %v1488
        %1495 = vrot.lane.b32.xlu0 %v901, 96
        %v1496 = vpop.permute.xlu0 %1495
        %1497 = vrot.lane.b32.xlu0 %v906, 96
        %v1498 = vpop.permute.xlu0 %1497
        %1501 = vrot.lane.b32.xlu0 %v901, 64
        %v1502 = vpop.permute.xlu0 %1501
        %1503 = vrot.lane.b32.xlu0 %v906, 64
        %v1504 = vpop.permute.xlu0 %1503
        %1507 = vrot.lane.b32.xlu0 %v901, 32
        %v1508 = vpop.permute.xlu0 %1507
        %1509 = vrot.lane.b32.xlu0 %v906, 32
        %v1510 = vpop.permute.xlu0 %1509
        %v1513 = vcombine.low %v901, %v1502
        %v1514 = vcombine.high %v901, %v1502
        %v1516 = vunpack.c.l.s4 1983009808
        %v1517 = vunpack.c.0.s8 %v1516
        %v1518 = vlaneseq
        %v1519 = vshrl.u32 %v1518, 7
        %v1520 = vsub.s32 %v1517, %v1519
        %v1521 = vrot.slane %v1513, %v1520
        %v1523 = vunpack.c.l.s4 1983009808
        %v1524 = vunpack.c.0.s8 %v1523
        %v1525 = vlaneseq
        %v1526 = vshrl.u32 %v1525, 7
        %v1527 = vsub.s32 %v1524, %v1526
        %v1528 = vrot.slane %v1514, %v1527
        %v1529 = vcombine.low %v1496, %v1508
        %v1530 = vcombine.high %v1496, %v1508
        %v1532 = vunpack.c.l.s4 1983009808
        %v1533 = vunpack.c.0.s8 %v1532
        %v1534 = vlaneseq
        %v1535 = vshrl.u32 %v1534, 7
        %v1536 = vsub.s32 %v1533, %v1535
        %v1537 = vrot.slane %v1529, %v1536
        %v1539 = vunpack.c.l.s4 1983009808
        %v1540 = vunpack.c.0.s8 %v1539
        %v1541 = vlaneseq
        %v1542 = vshrl.u32 %v1541, 7
        %v1543 = vsub.s32 %v1540, %v1542
        %v1544 = vrot.slane %v1530, %v1543
        %v1545 = vcombine.low %v1521, %v1537
        %v1546 = vcombine.high %v1521, %v1537
        %v1548 = vunpack.c.l.s4 1934713408
        %v1549 = vunpack.c.0.s8 %v1548
        %v1550 = vlaneseq
        %v1551 = vshrl.u32 %v1550, 7
        %v1552 = vsub.s32 %v1549, %v1551
        %v1553 = vrot.slane %v1545, %v1552
        %v1555 = vunpack.c.l.s4 1934713408
        %v1556 = vunpack.c.0.s8 %v1555
        %v1557 = vlaneseq
        %v1558 = vshrl.u32 %v1557, 7
        %v1559 = vsub.s32 %v1556, %v1558
        %v1560 = vrot.slane %v1546, %v1559
        %v1561 = vcombine.low %v1528, %v1544
        %v1562 = vcombine.high %v1528, %v1544
        %v1564 = vunpack.c.l.s4 1934713408
        %v1565 = vunpack.c.0.s8 %v1564
        %v1566 = vlaneseq
        %v1567 = vshrl.u32 %v1566, 7
        %v1568 = vsub.s32 %v1565, %v1567
        %v1569 = vrot.slane %v1561, %v1568
        %v1571 = vunpack.c.l.s4 1934713408
        %v1572 = vunpack.c.0.s8 %v1571
        %v1573 = vlaneseq
        %v1574 = vshrl.u32 %v1573, 7
        %v1575 = vsub.s32 %v1572, %v1574
        %v1576 = vrot.slane %v1562, %v1575
        %v1577 = vcombine.high %v1553, 0.0
        %v1578 = vcombine.high %v1560, 0.0
        %v1579 = vcombine.high %v1569, 0.0
        %v1580 = vcombine.high %v1576, 0.0
        %v1581 = vcombine.low %v906, %v1504
        %v1582 = vcombine.high %v906, %v1504
        %v1584 = vunpack.c.l.s4 1983009808
        %v1585 = vunpack.c.0.s8 %v1584
        %v1586 = vlaneseq
        %v1587 = vshrl.u32 %v1586, 7
        %v1588 = vsub.s32 %v1585, %v1587
        %v1589 = vrot.slane %v1581, %v1588
        %v1591 = vunpack.c.l.s4 1983009808
        %v1592 = vunpack.c.0.s8 %v1591
        %v1593 = vlaneseq
        %v1594 = vshrl.u32 %v1593, 7
        %v1595 = vsub.s32 %v1592, %v1594
        %v1596 = vrot.slane %v1582, %v1595
        %v1597 = vcombine.low %v1498, %v1510
        %v1598 = vcombine.high %v1498, %v1510
        %v1600 = vunpack.c.l.s4 1983009808
        %v1601 = vunpack.c.0.s8 %v1600
        %v1602 = vlaneseq
        %v1603 = vshrl.u32 %v1602, 7
        %v1604 = vsub.s32 %v1601, %v1603
        %v1605 = vrot.slane %v1597, %v1604
        %v1607 = vunpack.c.l.s4 1983009808
        %v1608 = vunpack.c.0.s8 %v1607
        %v1609 = vlaneseq
        %v1610 = vshrl.u32 %v1609, 7
        %v1611 = vsub.s32 %v1608, %v1610
        %v1612 = vrot.slane %v1598, %v1611
        %v1613 = vcombine.low %v1589, %v1605
        %v1614 = vcombine.high %v1589, %v1605
        %v1616 = vunpack.c.l.s4 1934713408
        %v1617 = vunpack.c.0.s8 %v1616
        %v1618 = vlaneseq
        %v1619 = vshrl.u32 %v1618, 7
        %v1620 = vsub.s32 %v1617, %v1619
        %v1621 = vrot.slane %v1613, %v1620
        %v1623 = vunpack.c.l.s4 1934713408
        %v1624 = vunpack.c.0.s8 %v1623
        %v1625 = vlaneseq
        %v1626 = vshrl.u32 %v1625, 7
        %v1627 = vsub.s32 %v1624, %v1626
        %v1628 = vrot.slane %v1614, %v1627
        %v1629 = vcombine.low %v1596, %v1612
        %v1630 = vcombine.high %v1596, %v1612
        %v1632 = vunpack.c.l.s4 1934713408
        %v1633 = vunpack.c.0.s8 %v1632
        %v1634 = vlaneseq
        %v1635 = vshrl.u32 %v1634, 7
        %v1636 = vsub.s32 %v1633, %v1635
        %v1637 = vrot.slane %v1629, %v1636
        %v1639 = vunpack.c.l.s4 1934713408
        %v1640 = vunpack.c.0.s8 %v1639
        %v1641 = vlaneseq
        %v1642 = vshrl.u32 %v1641, 7
        %v1643 = vsub.s32 %v1640, %v1642
        %v1644 = vrot.slane %v1630, %v1643
        %v1645 = vcombine.high %v1621, 0.0
        %v1646 = vcombine.high %v1628, 0.0
        %v1647 = vcombine.high %v1637, 0.0
        %v1648 = vcombine.high %v1644, 0.0
        %v1649 = vcombine.low %v1553, %v1560
        %v1651 = vunpack.c.l.s4 1983009808
        %v1652 = vunpack.c.0.s8 %v1651
        %v1653 = vlaneseq
        %v1654 = vshrl.u32 %v1653, 7
        %v1655 = vsub.s32 %v1652, %v1654
        %v1656 = vrot.slane %v1649, %v1655
        %v1657 = vcombine.low %v1577, %v1578
        %v1659 = vunpack.c.l.s4 1983009808
        %v1660 = vunpack.c.0.s8 %v1659
        %v1661 = vlaneseq
        %v1662 = vshrl.u32 %v1661, 7
        %v1663 = vsub.s32 %v1660, %v1662
        %v1664 = vrot.slane %v1657, %v1663
        %v1665 = vcombine.low %v1569, %v1576
        %v1667 = vunpack.c.l.s4 1983009808
        %v1668 = vunpack.c.0.s8 %v1667
        %v1669 = vlaneseq
        %v1670 = vshrl.u32 %v1669, 7
        %v1671 = vsub.s32 %v1668, %v1670
        %v1672 = vrot.slane %v1665, %v1671
        %v1673 = vcombine.low %v1579, %v1580
        %v1675 = vunpack.c.l.s4 1983009808
        %v1676 = vunpack.c.0.s8 %v1675
        %v1677 = vlaneseq
        %v1678 = vshrl.u32 %v1677, 7
        %v1679 = vsub.s32 %v1676, %v1678
        %v1680 = vrot.slane %v1673, %v1679
        %v1681 = vcombine.low %v1656, %v1664
        %v1682 = vcombine.high %v1656, %v1664
        %v1684 = vunpack.c.l.s4 1934713408
        %v1685 = vunpack.c.0.s8 %v1684
        %v1686 = vlaneseq
        %v1687 = vshrl.u32 %v1686, 7
        %v1688 = vsub.s32 %v1685, %v1687
        %v1689 = vrot.slane %v1681, %v1688
        %v1691 = vunpack.c.l.s4 1934713408
        %v1692 = vunpack.c.0.s8 %v1691
        %v1693 = vlaneseq
        %v1694 = vshrl.u32 %v1693, 7
        %v1695 = vsub.s32 %v1692, %v1694
        %v1696 = vrot.slane %v1682, %v1695
        %v1697 = vcombine.low %v1672, %v1680
        %v1698 = vcombine.high %v1672, %v1680
        %v1700 = vunpack.c.l.s4 1934713408
        %v1701 = vunpack.c.0.s8 %v1700
        %v1702 = vlaneseq
        %v1703 = vshrl.u32 %v1702, 7
        %v1704 = vsub.s32 %v1701, %v1703
        %v1705 = vrot.slane %v1697, %v1704
        %v1707 = vunpack.c.l.s4 1934713408
        %v1708 = vunpack.c.0.s8 %v1707
        %v1709 = vlaneseq
        %v1710 = vshrl.u32 %v1709, 7
        %v1711 = vsub.s32 %v1708, %v1710
        %v1712 = vrot.slane %v1698, %v1711
        %v1713 = vcombine.low %v1689, %v1705
        %v1714 = vcombine.high %v1689, %v1705
        %v1715 = vcombine.low %v1696, %v1712
        %v1716 = vcombine.high %v1696, %v1712
        %v1717 = vcombine.low %v1621, %v1628
        %v1719 = vunpack.c.l.s4 1983009808
        %v1720 = vunpack.c.0.s8 %v1719
        %v1721 = vlaneseq
        %v1722 = vshrl.u32 %v1721, 7
        %v1723 = vsub.s32 %v1720, %v1722
        %v1724 = vrot.slane %v1717, %v1723
        %v1725 = vcombine.low %v1645, %v1646
        %v1727 = vunpack.c.l.s4 1983009808
        %v1728 = vunpack.c.0.s8 %v1727
        %v1729 = vlaneseq
        %v1730 = vshrl.u32 %v1729, 7
        %v1731 = vsub.s32 %v1728, %v1730
        %v1732 = vrot.slane %v1725, %v1731
        %v1733 = vcombine.low %v1637, %v1644
        %v1735 = vunpack.c.l.s4 1983009808
        %v1736 = vunpack.c.0.s8 %v1735
        %v1737 = vlaneseq
        %v1738 = vshrl.u32 %v1737, 7
        %v1739 = vsub.s32 %v1736, %v1738
        %v1740 = vrot.slane %v1733, %v1739
        %v1741 = vcombine.low %v1647, %v1648
        %v1743 = vunpack.c.l.s4 1983009808
        %v1744 = vunpack.c.0.s8 %v1743
        %v1745 = vlaneseq
        %v1746 = vshrl.u32 %v1745, 7
        %v1747 = vsub.s32 %v1744, %v1746
        %v1748 = vrot.slane %v1741, %v1747
        %v1749 = vcombine.low %v1724, %v1732
        %v1750 = vcombine.high %v1724, %v1732
        %v1752 = vunpack.c.l.s4 1934713408
        %v1753 = vunpack.c.0.s8 %v1752
        %v1754 = vlaneseq
        %v1755 = vshrl.u32 %v1754, 7
        %v1756 = vsub.s32 %v1753, %v1755
        %v1757 = vrot.slane %v1749, %v1756
        %v1759 = vunpack.c.l.s4 1934713408
        %v1760 = vunpack.c.0.s8 %v1759
        %v1761 = vlaneseq
        %v1762 = vshrl.u32 %v1761, 7
        %v1763 = vsub.s32 %v1760, %v1762
        %v1764 = vrot.slane %v1750, %v1763
        %v1765 = vcombine.low %v1740, %v1748
        %v1766 = vcombine.high %v1740, %v1748
        %v1768 = vunpack.c.l.s4 1934713408
        %v1769 = vunpack.c.0.s8 %v1768
        %v1770 = vlaneseq
        %v1771 = vshrl.u32 %v1770, 7
        %v1772 = vsub.s32 %v1769, %v1771
        %v1773 = vrot.slane %v1765, %v1772
        %v1775 = vunpack.c.l.s4 1934713408
        %v1776 = vunpack.c.0.s8 %v1775
        %v1777 = vlaneseq
        %v1778 = vshrl.u32 %v1777, 7
        %v1779 = vsub.s32 %v1776, %v1778
        %v1780 = vrot.slane %v1766, %v1779
        %v1781 = vcombine.low %v1757, %v1773
        %v1782 = vcombine.high %v1757, %v1773
        %v1783 = vcombine.low %v1764, %v1780
        %v1784 = vcombine.high %v1764, %v1780
        %vm1785 = vcmask 261120
        %v1787 = vsel %vm1785, %v1129, 0
        %v1790 = vsel %vm1785, %v1197, 0
        %v1793 = vsel %vm1785, %v1421, 0
        %v1796 = vsel %vm1785, %v1489, 0
        %1798 = vmatprep.subr.mxu0 0.0
        %1799 = vmatpush1.xpose.msra.mxu0 %v1793
        %1800 = vmatprep.subr.mxu0 0.0
        %1801 = vmatpush1.xpose.msra.mxu0 %v1796
        %1802 = vmatprep.subr.mxu0 0.0
        %1803 = vmatpush1.xpose.msra.mxu0 0.0
        %1804 = vmatprep.subr.mxu0 0.0
        %1805 = vmatpush1.xpose.msra.mxu0 0.0
        %1806 = vmatprep.subr.mxu0 0.0
        %1807 = vmatpush1.xpose.msra.mxu0 0.0
        %1808 = vmatprep.subr.mxu0 0.0
        %1809 = vmatpush1.xpose.msra.mxu0 0.0
        %1810 = vmatprep.subr.mxu0 0.0
        %1811 = vmatpush1.xpose.msra.mxu0 0.0
        %1812 = vmatprep.subr.mxu0 0.0
        %1813 = vmatpush1.xpose.msra.mxu0 0.0
        %1814 = vmatprep.subr.mxu0 0.0
        %1815 = vmatpush1.xpose.msra.mxu0 0.0
        %1816 = vmatprep.subr.mxu0 0.0
        %1817 = vmatpush1.xpose.msra.mxu0 0.0
        %1818 = vmatprep.subr.mxu0 0.0
        %1819 = vmatpush1.xpose.msra.mxu0 0.0
        %1820 = vmatprep.subr.mxu0 0.0
        %1821 = vmatpush1.xpose.msra.mxu0 0.0
        %1822 = vmatprep.subr.mxu0 0.0
        %1823 = vmatpush1.xpose.msra.mxu0 0.0
        %1824 = vmatprep.subr.mxu0 0.0
        %1825 = vmatpush1.xpose.msra.mxu0 0.0
        %1826 = vmatprep.subr.mxu0 0.0
        %1827 = vmatpush1.xpose.msra.mxu0 0.0
        %1828 = vmatprep.subr.mxu0 0.0
        %1829 = vmatpush1.xpose.msra.mxu0 0.0
        %1830 = vmatprep.subr.mxu0 0.0
        %1831 = vmatpush1.xpose.msra.mxu0 0.0
        %1832 = vmatprep.subr.mxu0 0.0
        %1833 = vmatpush1.xpose.msra.mxu0 0.0
        %1834 = vmatprep.subr.mxu0 0.0
        %1835 = vmatpush1.xpose.msra.mxu0 0.0
        %1836 = vmatprep.subr.mxu0 0.0
        %1837 = vmatpush1.xpose.msra.mxu0 0.0
        %1838 = vmatprep.subr.mxu0 0.0
        %1839 = vmatpush1.xpose.msra.mxu0 0.0
        %1840 = vmatprep.subr.mxu0 0.0
        %1841 = vmatpush1.xpose.msra.mxu0 0.0
        %1842 = vmatprep.subr.mxu0 0.0
        %1843 = vmatpush1.xpose.msra.mxu0 0.0
        %1844 = vmatprep.subr.mxu0 0.0
        %1845 = vmatpush1.xpose.msra.mxu0 0.0
        %1846 = vmatprep.subr.mxu0 0.0
        %1847 = vmatpush1.xpose.msra.mxu0 0.0
        %1848 = vmatprep.subr.mxu0 0.0
        %1849 = vmatpush1.xpose.msra.mxu0 0.0
        %1850 = vmatprep.subr.mxu0 0.0
        %1851 = vmatpush1.xpose.msra.mxu0 0.0
        %1852 = vmatprep.subr.mxu0 0.0
        %1853 = vmatpush1.xpose.msra.mxu0 0.0
        %1854 = vmatprep.subr.mxu0 0.0
        %1855 = vmatpush1.xpose.msra.mxu0 0.0
        %1856 = vmatprep.subr.mxu0 0.0
        %1857 = vmatpush1.xpose.msra.mxu0 0.0
        %1858 = vmatprep.subr.mxu0 0.0
        %1859 = vmatpush1.xpose.msra.mxu0 0.0
        %1860 = vmatprep.subr.mxu0 0.0
        %1861 = vmatpush1.xpose.msra.mxu0 0.0
        %1862 = vmatprep.mubr.f32.mxu0 0.0
        %1863 = vmatmul.mubr.f32.gmra.mrb[0].mxu0 %v1787
        %v1864 = vpop.f32.mrb[0].mxu0
        %v1865 = vadd.f32 0.0, %v1864
        %v1866 = vpop.f32.mrb[0].mxu0
        %1867 = vmatprep.mubr.f32.mxu0 0.0
        %1868 = vmatmul.mubr.f32.gmra.mrb[0].mxu0 %v1790
        %v1869 = vpop.f32.mrb[0].mxu0
        %v1870 = vadd.f32 0.0, %v1869
        %v1871 = vpop.f32.mrb[0].mxu0
        %1872 = vdwg.mxu0
        %v1874 = vsel %vm1785, %v1130, 0
        %v1877 = vsel %vm1785, %v1198, 0
        %v1880 = vsel %vm1785, %v1422, 0
        %v1883 = vsel %vm1785, %v1490, 0
        %1885 = vmatprep.subr.mxu0 0.0
        %1886 = vmatpush1.xpose.msra.mxu0 %v1880
        %1887 = vmatprep.subr.mxu0 0.0
        %1888 = vmatpush1.xpose.msra.mxu0 %v1883
        %1889 = vmatprep.subr.mxu0 0.0
        %1890 = vmatpush1.xpose.msra.mxu0 0.0
        %1891 = vmatprep.subr.mxu0 0.0
        %1892 = vmatpush1.xpose.msra.mxu0 0.0
        %1893 = vmatprep.subr.mxu0 0.0
        %1894 = vmatpush1.xpose.msra.mxu0 0.0
        %1895 = vmatprep.subr.mxu0 0.0
        %1896 = vmatpush1.xpose.msra.mxu0 0.0
        %1897 = vmatprep.subr.mxu0 0.0
        %1898 = vmatpush1.xpose.msra.mxu0 0.0
        %1899 = vmatprep.subr.mxu0 0.0
        %1900 = vmatpush1.xpose.msra.mxu0 0.0
        %1901 = vmatprep.subr.mxu0 0.0
        %1902 = vmatpush1.xpose.msra.mxu0 0.0
        %1903 = vmatprep.subr.mxu0 0.0
        %1904 = vmatpush1.xpose.msra.mxu0 0.0
        %1905 = vmatprep.subr.mxu0 0.0
        %1906 = vmatpush1.xpose.msra.mxu0 0.0
        %1907 = vmatprep.subr.mxu0 0.0
        %1908 = vmatpush1.xpose.msra.mxu0 0.0
        %1909 = vmatprep.subr.mxu0 0.0
        %1910 = vmatpush1.xpose.msra.mxu0 0.0
        %1911 = vmatprep.subr.mxu0 0.0
        %1912 = vmatpush1.xpose.msra.mxu0 0.0
        %1913 = vmatprep.subr.mxu0 0.0
        %1914 = vmatpush1.xpose.msra.mxu0 0.0
        %1915 = vmatprep.subr.mxu0 0.0
        %1916 = vmatpush1.xpose.msra.mxu0 0.0
        %1917 = vmatprep.subr.mxu0 0.0
        %1918 = vmatpush1.xpose.msra.mxu0 0.0
        %1919 = vmatprep.subr.mxu0 0.0
        %1920 = vmatpush1.xpose.msra.mxu0 0.0
        %1921 = vmatprep.subr.mxu0 0.0
        %1922 = vmatpush1.xpose.msra.mxu0 0.0
        %1923 = vmatprep.subr.mxu0 0.0
        %1924 = vmatpush1.xpose.msra.mxu0 0.0
        %1925 = vmatprep.subr.mxu0 0.0
        %1926 = vmatpush1.xpose.msra.mxu0 0.0
        %1927 = vmatprep.subr.mxu0 0.0
        %1928 = vmatpush1.xpose.msra.mxu0 0.0
        %1929 = vmatprep.subr.mxu0 0.0
        %1930 = vmatpush1.xpose.msra.mxu0 0.0
        %1931 = vmatprep.subr.mxu0 0.0
        %1932 = vmatpush1.xpose.msra.mxu0 0.0
        %1933 = vmatprep.subr.mxu0 0.0
        %1934 = vmatpush1.xpose.msra.mxu0 0.0
        %1935 = vmatprep.subr.mxu0 0.0
        %1936 = vmatpush1.xpose.msra.mxu0 0.0
        %1937 = vmatprep.subr.mxu0 0.0
        %1938 = vmatpush1.xpose.msra.mxu0 0.0
        %1939 = vmatprep.subr.mxu0 0.0
        %1940 = vmatpush1.xpose.msra.mxu0 0.0
        %1941 = vmatprep.subr.mxu0 0.0
        %1942 = vmatpush1.xpose.msra.mxu0 0.0
        %1943 = vmatprep.subr.mxu0 0.0
        %1944 = vmatpush1.xpose.msra.mxu0 0.0
        %1945 = vmatprep.subr.mxu0 0.0
        %1946 = vmatpush1.xpose.msra.mxu0 0.0
        %1947 = vmatprep.subr.mxu0 0.0
        %1948 = vmatpush1.xpose.msra.mxu0 0.0
        %1949 = vmatprep.mubr.f32.mxu0 0.0
        %1950 = vmatmul.mubr.f32.gmra.mrb[0].mxu0 %v1874
        %v1951 = vpop.f32.mrb[0].mxu0
        %v1952 = vadd.f32 0.0, %v1951
        %v1953 = vpop.f32.mrb[0].mxu0
        %1954 = vmatprep.mubr.f32.mxu0 0.0
        %1955 = vmatmul.mubr.f32.gmra.mrb[0].mxu0 %v1877
        %v1956 = vpop.f32.mrb[0].mxu0
        %v1957 = vadd.f32 0.0, %v1956
        %v1958 = vpop.f32.mrb[0].mxu0
        %1959 = vdwg.mxu0
        %v1961 = vsel %vm1785, %v1131, 0
        %v1964 = vsel %vm1785, %v1199, 0
        %v1967 = vsel %vm1785, %v1423, 0
        %v1970 = vsel %vm1785, %v1491, 0
        %1972 = vmatprep.subr.mxu0 0.0
        %1973 = vmatpush1.xpose.msra.mxu0 %v1967
        %1974 = vmatprep.subr.mxu0 0.0
        %1975 = vmatpush1.xpose.msra.mxu0 %v1970
        %1976 = vmatprep.subr.mxu0 0.0
        %1977 = vmatpush1.xpose.msra.mxu0 0.0
        %1978 = vmatprep.subr.mxu0 0.0
        %1979 = vmatpush1.xpose.msra.mxu0 0.0
        %1980 = vmatprep.subr.mxu0 0.0
        %1981 = vmatpush1.xpose.msra.mxu0 0.0
        %1982 = vmatprep.subr.mxu0 0.0
        %1983 = vmatpush1.xpose.msra.mxu0 0.0
        %1984 = vmatprep.subr.mxu0 0.0
        %1985 = vmatpush1.xpose.msra.mxu0 0.0
        %1986 = vmatprep.subr.mxu0 0.0
        %1987 = vmatpush1.xpose.msra.mxu0 0.0
        %1988 = vmatprep.subr.mxu0 0.0
        %1989 = vmatpush1.xpose.msra.mxu0 0.0
        %1990 = vmatprep.subr.mxu0 0.0
        %1991 = vmatpush1.xpose.msra.mxu0 0.0
        %1992 = vmatprep.subr.mxu0 0.0
        %1993 = vmatpush1.xpose.msra.mxu0 0.0
        %1994 = vmatprep.subr.mxu0 0.0
        %1995 = vmatpush1.xpose.msra.mxu0 0.0
        %1996 = vmatprep.subr.mxu0 0.0
        %1997 = vmatpush1.xpose.msra.mxu0 0.0
        %1998 = vmatprep.subr.mxu0 0.0
        %1999 = vmatpush1.xpose.msra.mxu0 0.0
        %2000 = vmatprep.subr.mxu0 0.0
        %2001 = vmatpush1.xpose.msra.mxu0 0.0
        %2002 = vmatprep.subr.mxu0 0.0
        %2003 = vmatpush1.xpose.msra.mxu0 0.0
        %2004 = vmatprep.subr.mxu0 0.0
        %2005 = vmatpush1.xpose.msra.mxu0 0.0
        %2006 = vmatprep.subr.mxu0 0.0
        %2007 = vmatpush1.xpose.msra.mxu0 0.0
        %2008 = vmatprep.subr.mxu0 0.0
        %2009 = vmatpush1.xpose.msra.mxu0 0.0
        %2010 = vmatprep.subr.mxu0 0.0
        %2011 = vmatpush1.xpose.msra.mxu0 0.0
        %2012 = vmatprep.subr.mxu0 0.0
        %2013 = vmatpush1.xpose.msra.mxu0 0.0
        %2014 = vmatprep.subr.mxu0 0.0
        %2015 = vmatpush1.xpose.msra.mxu0 0.0
        %2016 = vmatprep.subr.mxu0 0.0
        %2017 = vmatpush1.xpose.msra.mxu0 0.0
        %2018 = vmatprep.subr.mxu0 0.0
        %2019 = vmatpush1.xpose.msra.mxu0 0.0
        %2020 = vmatprep.subr.mxu0 0.0
        %2021 = vmatpush1.xpose.msra.mxu0 0.0
        %2022 = vmatprep.subr.mxu0 0.0
        %2023 = vmatpush1.xpose.msra.mxu0 0.0
        %2024 = vmatprep.subr.mxu0 0.0
        %2025 = vmatpush1.xpose.msra.mxu0 0.0
        %2026 = vmatprep.subr.mxu0 0.0
        %2027 = vmatpush1.xpose.msra.mxu0 0.0
        %2028 = vmatprep.subr.mxu0 0.0
        %2029 = vmatpush1.xpose.msra.mxu0 0.0
        %2030 = vmatprep.subr.mxu0 0.0
        %2031 = vmatpush1.xpose.msra.mxu0 0.0
        %2032 = vmatprep.subr.mxu0 0.0
        %2033 = vmatpush1.xpose.msra.mxu0 0.0
        %2034 = vmatprep.subr.mxu0 0.0
        %2035 = vmatpush1.xpose.msra.mxu0 0.0
        %2036 = vmatprep.mubr.f32.mxu0 0.0
        %2037 = vmatmul.mubr.f32.gmra.mrb[0].mxu0 %v1961
        %v2038 = vpop.f32.mrb[0].mxu0
        %v2039 = vadd.f32 0.0, %v2038
        %v2040 = vpop.f32.mrb[0].mxu0
        %2041 = vmatprep.mubr.f32.mxu0 0.0
        %2042 = vmatmul.mubr.f32.gmra.mrb[0].mxu0 %v1964
        %v2043 = vpop.f32.mrb[0].mxu0
        %v2044 = vadd.f32 0.0, %v2043
        %v2045 = vpop.f32.mrb[0].mxu0
        %2046 = vdwg.mxu0
        %v2048 = vsel %vm1785, %v1132, 0
        %v2051 = vsel %vm1785, %v1200, 0
        %v2054 = vsel %vm1785, %v1424, 0
        %v2057 = vsel %vm1785, %v1492, 0
        %2059 = vmatprep.subr.mxu0 0.0
        %2060 = vmatpush1.xpose.msra.mxu0 %v2054
        %2061 = vmatprep.subr.mxu0 0.0
        %2062 = vmatpush1.xpose.msra.mxu0 %v2057
        %2063 = vmatprep.subr.mxu0 0.0
        %2064 = vmatpush1.xpose.msra.mxu0 0.0
        %2065 = vmatprep.subr.mxu0 0.0
        %2066 = vmatpush1.xpose.msra.mxu0 0.0
        %2067 = vmatprep.subr.mxu0 0.0
        %2068 = vmatpush1.xpose.msra.mxu0 0.0
        %2069 = vmatprep.subr.mxu0 0.0
        %2070 = vmatpush1.xpose.msra.mxu0 0.0
        %2071 = vmatprep.subr.mxu0 0.0
        %2072 = vmatpush1.xpose.msra.mxu0 0.0
        %2073 = vmatprep.subr.mxu0 0.0
        %2074 = vmatpush1.xpose.msra.mxu0 0.0
        %2075 = vmatprep.subr.mxu0 0.0
        %2076 = vmatpush1.xpose.msra.mxu0 0.0
        %2077 = vmatprep.subr.mxu0 0.0
        %2078 = vmatpush1.xpose.msra.mxu0 0.0
        %2079 = vmatprep.subr.mxu0 0.0
        %2080 = vmatpush1.xpose.msra.mxu0 0.0
        %2081 = vmatprep.subr.mxu0 0.0
        %2082 = vmatpush1.xpose.msra.mxu0 0.0
        %2083 = vmatprep.subr.mxu0 0.0
        %2084 = vmatpush1.xpose.msra.mxu0 0.0
        %2085 = vmatprep.subr.mxu0 0.0
        %2086 = vmatpush1.xpose.msra.mxu0 0.0
        %2087 = vmatprep.subr.mxu0 0.0
        %2088 = vmatpush1.xpose.msra.mxu0 0.0
        %2089 = vmatprep.subr.mxu0 0.0
        %2090 = vmatpush1.xpose.msra.mxu0 0.0
        %2091 = vmatprep.subr.mxu0 0.0
        %2092 = vmatpush1.xpose.msra.mxu0 0.0
        %2093 = vmatprep.subr.mxu0 0.0
        %2094 = vmatpush1.xpose.msra.mxu0 0.0
        %2095 = vmatprep.subr.mxu0 0.0
        %2096 = vmatpush1.xpose.msra.mxu0 0.0
        %2097 = vmatprep.subr.mxu0 0.0
        %2098 = vmatpush1.xpose.msra.mxu0 0.0
        %2099 = vmatprep.subr.mxu0 0.0
        %2100 = vmatpush1.xpose.msra.mxu0 0.0
        %2101 = vmatprep.subr.mxu0 0.0
        %2102 = vmatpush1.xpose.msra.mxu0 0.0
        %2103 = vmatprep.subr.mxu0 0.0
        %2104 = vmatpush1.xpose.msra.mxu0 0.0
        %2105 = vmatprep.subr.mxu0 0.0
        %2106 = vmatpush1.xpose.msra.mxu0 0.0
        %2107 = vmatprep.subr.mxu0 0.0
        %2108 = vmatpush1.xpose.msra.mxu0 0.0
        %2109 = vmatprep.subr.mxu0 0.0
        %2110 = vmatpush1.xpose.msra.mxu0 0.0
        %2111 = vmatprep.subr.mxu0 0.0
        %2112 = vmatpush1.xpose.msra.mxu0 0.0
        %2113 = vmatprep.subr.mxu0 0.0
        %2114 = vmatpush1.xpose.msra.mxu0 0.0
        %2115 = vmatprep.subr.mxu0 0.0
        %2116 = vmatpush1.xpose.msra.mxu0 0.0
        %2117 = vmatprep.subr.mxu0 0.0
        %2118 = vmatpush1.xpose.msra.mxu0 0.0
        %2119 = vmatprep.subr.mxu0 0.0
        %2120 = vmatpush1.xpose.msra.mxu0 0.0
        %2121 = vmatprep.subr.mxu0 0.0
        %2122 = vmatpush1.xpose.msra.mxu0 0.0
        %2123 = vmatprep.mubr.f32.mxu0 0.0
        %2124 = vmatmul.mubr.f32.gmra.mrb[0].mxu0 %v2048
        %v2125 = vpop.f32.mrb[0].mxu0
        %v2126 = vadd.f32 0.0, %v2125
        %v2127 = vpop.f32.mrb[0].mxu0
        %2128 = vmatprep.mubr.f32.mxu0 0.0
        %2129 = vmatmul.mubr.f32.gmra.mrb[0].mxu0 %v2051
        %v2130 = vpop.f32.mrb[0].mxu0
        %v2131 = vadd.f32 0.0, %v2130
        %v2132 = vpop.f32.mrb[0].mxu0
        %2133 = vdwg.mxu0
        %v2134 = vmul.f32 %v1865, 0.088388346
        %v2135 = vmul.f32 %v1870, 0.088388346
        %v2136 = vmul.f32 %v1952, 0.088388346
        %v2137 = vmul.f32 %v1957, 0.088388346
        %v2138 = vmul.f32 %v2039, 0.088388346
        %v2139 = vmul.f32 %v2044, 0.088388346
        %v2140 = vmul.f32 %v2126, 0.088388346
        %v2141 = vmul.f32 %v2131, 0.088388346
        %vm2142 = vcmp.eq.f32.partialorder %v613, 0.0
        %vm2143 = vcmp.eq.f32.partialorder %v614, 0.0
        %v2144 = vsel %vm2142, 1, 0
        %v2145 = vsel %vm2143, 1, 0
        %vm2146 = vcmp.eq.s32.totalorder %v2144, 1
        %vm2147 = vcmp.eq.s32.totalorder %v2145, 1
        %v2148 = vsel %vm2146, -1e-10, %v2134
        %v2149 = vsel %vm2147, -1e-10, %v2135
        %v2150 = vsel %vm2146, -1e-10, %v2136
        %v2151 = vsel %vm2147, -1e-10, %v2137
        %v2152 = vsel %vm2146, -1e-10, %v2138
        %v2153 = vsel %vm2147, -1e-10, %v2139
        %v2154 = vsel %vm2146, -1e-10, %v2140
        %v2155 = vsel %vm2147, -1e-10, %v2141
        %vm2156 = vcmask 130048
        %v2157 = vsel %vm2156, %v2148, -inf
        %2158 = vmax.xlane.f32.xlu0 %v2157
        %v2159 = vpop.xlane.xlu0 %2158
        %v2160 = vsel %vm2156, %v2149, -inf
        %2161 = vmax.xlane.f32.xlu0 %v2160
        %v2162 = vpop.xlane.xlu0 %2161
        %v2163 = vsel %vm2156, %v2150, -inf
        %2164 = vmax.xlane.f32.xlu0 %v2163
        %v2165 = vpop.xlane.xlu0 %2164
        %v2166 = vsel %vm2156, %v2151, -inf
        %2167 = vmax.xlane.f32.xlu0 %v2166
        %v2168 = vpop.xlane.xlu0 %2167
        %v2169 = vsel %vm2156, %v2152, -inf
        %2170 = vmax.xlane.f32.xlu0 %v2169
        %v2171 = vpop.xlane.xlu0 %2170
        %v2172 = vsel %vm2156, %v2153, -inf
        %2173 = vmax.xlane.f32.xlu0 %v2172
        %v2174 = vpop.xlane.xlu0 %2173
        %v2175 = vsel %vm2156, %v2154, -inf
        %2176 = vmax.xlane.f32.xlu0 %v2175
        %v2177 = vpop.xlane.xlu0 %2176
        %v2178 = vsel %vm2156, %v2155, -inf
        %2179 = vmax.xlane.f32.xlu0 %v2178
        %v2180 = vpop.xlane.xlu0 %2179
        %v2181 = vsub.f32 %v2148, %v2159
        %v2182 = vsub.f32 %v2149, %v2162
        %v2183 = vsub.f32 %v2150, %v2165
        %v2184 = vsub.f32 %v2151, %v2168
        %v2185 = vsub.f32 %v2152, %v2171
        %v2186 = vsub.f32 %v2153, %v2174
        %v2187 = vsub.f32 %v2154, %v2177
        %v2188 = vsub.f32 %v2155, %v2180
        %v2189 = vmul.f32 %v2181, 1.442695
        %v2190 = vpow.pop %v2189
        %v2191 = vmul.f32 %v2182, 1.442695
        %v2192 = vpow.pop %v2191
        %v2193 = vmul.f32 %v2183, 1.442695
        %v2194 = vpow.pop %v2193
        %v2195 = vmul.f32 %v2184, 1.442695
        %v2196 = vpow.pop %v2195
        %v2197 = vmul.f32 %v2185, 1.442695
        %v2198 = vpow.pop %v2197
        %v2199 = vmul.f32 %v2186, 1.442695
        %v2200 = vpow.pop %v2199
        %v2201 = vmul.f32 %v2187, 1.442695
        %v2202 = vpow.pop %v2201
        %v2203 = vmul.f32 %v2188, 1.442695
        %v2204 = vpow.pop %v2203
        %v2205 = vsel %vm2156, %v2190, 0.0
        %2206 = vadd.xlane.f32.xlu0 %v2205
        %v2207 = vpop.xlane.xlu0 %2206
        %v2208 = vsel %vm2156, %v2192, 0.0
        %2209 = vadd.xlane.f32.xlu0 %v2208
        %v2210 = vpop.xlane.xlu0 %2209
        %v2211 = vsel %vm2156, %v2194, 0.0
        %2212 = vadd.xlane.f32.xlu0 %v2211
        %v2213 = vpop.xlane.xlu0 %2212
        %v2214 = vsel %vm2156, %v2196, 0.0
        %2215 = vadd.xlane.f32.xlu0 %v2214
        %v2216 = vpop.xlane.xlu0 %2215
        %v2217 = vsel %vm2156, %v2198, 0.0
        %2218 = vadd.xlane.f32.xlu0 %v2217
        %v2219 = vpop.xlane.xlu0 %2218
        %v2220 = vsel %vm2156, %v2200, 0.0
        %2221 = vadd.xlane.f32.xlu0 %v2220
        %v2222 = vpop.xlane.xlu0 %2221
        %v2223 = vsel %vm2156, %v2202, 0.0
        %2224 = vadd.xlane.f32.xlu0 %v2223
        %v2225 = vpop.xlane.xlu0 %2224
        %v2226 = vsel %vm2156, %v2204, 0.0
        %2227 = vadd.xlane.f32.xlu0 %v2226
        %v2228 = vpop.xlane.xlu0 %2227
        %v2229 = vrcp.pop %v2207
        %v2230 = vrcp.pop %v2210
        %v2231 = vrcp.pop %v2213
        %v2232 = vrcp.pop %v2216
        %v2233 = vrcp.pop %v2219
        %v2234 = vrcp.pop %v2222
        %v2235 = vrcp.pop %v2225
        %v2236 = vrcp.pop %v2228
        %v2237 = vmul.f32 %v2190, %v2229
        %v2238 = vmul.f32 %v2192, %v2230
        %v2239 = vmul.f32 %v2194, %v2231
        %v2240 = vmul.f32 %v2196, %v2232
        %v2241 = vmul.f32 %v2198, %v2233
        %v2242 = vmul.f32 %v2200, %v2234
        %v2243 = vmul.f32 %v2202, %v2235
        %v2244 = vmul.f32 %v2204, %v2236
        %v2246 = vsel %vm2156, %v2237, 0
        %v2249 = vsel %vm2156, %v2238, 0
        %2251 = vmatprep.subr.mxu0 0.0
        %2252 = vmatpush1.msra.mxu0 %v1713
        %2253 = vmatprep.subr.mxu0 0.0
        %2254 = vmatpush1.msra.mxu0 %v1781
        %2255 = vmatprep.subr.mxu0 0.0
        %2256 = vmatpush1.msra.mxu0 0.0
        %2257 = vmatprep.subr.mxu0 0.0
        %2258 = vmatpush1.msra.mxu0 0.0
        %2259 = vmatprep.subr.mxu0 0.0
        %2260 = vmatpush1.msra.mxu0 0.0
        %2261 = vmatprep.subr.mxu0 0.0
        %2262 = vmatpush1.msra.mxu0 0.0
        %2263 = vmatprep.subr.mxu0 0.0
        %2264 = vmatpush1.msra.mxu0 0.0
        %2265 = vmatprep.subr.mxu0 0.0
        %2266 = vmatpush1.msra.mxu0 0.0
        %2267 = vmatprep.subr.mxu0 0.0
        %2268 = vmatpush1.msra.mxu0 0.0
        %2269 = vmatprep.subr.mxu0 0.0
        %2270 = vmatpush1.msra.mxu0 0.0
        %2271 = vmatprep.subr.mxu0 0.0
        %2272 = vmatpush1.msra.mxu0 0.0
        %2273 = vmatprep.subr.mxu0 0.0
        %2274 = vmatpush1.msra.mxu0 0.0
        %2275 = vmatprep.subr.mxu0 0.0
        %2276 = vmatpush1.msra.mxu0 0.0
        %2277 = vmatprep.subr.mxu0 0.0
        %2278 = vmatpush1.msra.mxu0 0.0
        %2279 = vmatprep.subr.mxu0 0.0
        %2280 = vmatpush1.msra.mxu0 0.0
        %2281 = vmatprep.subr.mxu0 0.0
        %2282 = vmatpush1.msra.mxu0 0.0
        %2283 = vmatprep.subr.mxu0 0.0
        %2284 = vmatpush1.msra.mxu0 0.0
        %2285 = vmatprep.subr.mxu0 0.0
        %2286 = vmatpush1.msra.mxu0 0.0
        %2287 = vmatprep.subr.mxu0 0.0
        %2288 = vmatpush1.msra.mxu0 0.0
        %2289 = vmatprep.subr.mxu0 0.0
        %2290 = vmatpush1.msra.mxu0 0.0
        %2291 = vmatprep.subr.mxu0 0.0
        %2292 = vmatpush1.msra.mxu0 0.0
        %2293 = vmatprep.subr.mxu0 0.0
        %2294 = vmatpush1.msra.mxu0 0.0
        %2295 = vmatprep.subr.mxu0 0.0
        %2296 = vmatpush1.msra.mxu0 0.0
        %2297 = vmatprep.subr.mxu0 0.0
        %2298 = vmatpush1.msra.mxu0 0.0
        %2299 = vmatprep.subr.mxu0 0.0
        %2300 = vmatpush1.msra.mxu0 0.0
        %2301 = vmatprep.subr.mxu0 0.0
        %2302 = vmatpush1.msra.mxu0 0.0
        %2303 = vmatprep.subr.mxu0 0.0
        %2304 = vmatpush1.msra.mxu0 0.0
        %2305 = vmatprep.subr.mxu0 0.0
        %2306 = vmatpush1.msra.mxu0 0.0
        %2307 = vmatprep.subr.mxu0 0.0
        %2308 = vmatpush1.msra.mxu0 0.0
        %2309 = vmatprep.subr.mxu0 0.0
        %2310 = vmatpush1.msra.mxu0 0.0
        %2311 = vmatprep.subr.mxu0 0.0
        %2312 = vmatpush1.msra.mxu0 0.0
        %2313 = vmatprep.subr.mxu0 0.0
        %2314 = vmatpush1.msra.mxu0 0.0
        %2315 = vmatprep.mubr.f32.mxu0 0.0
        %2316 = vmatmul.mubr.f32.gmra.mrb[0].mxu0 %v2246
        %v2317 = vpop.f32.mrb[0].mxu0
        %v2318 = vadd.f32 0.0, %v2317
        %v2319 = vpop.f32.mrb[0].mxu0
        %2320 = vmatprep.mubr.f32.mxu0 0.0
        %2321 = vmatmul.mubr.f32.gmra.mrb[0].mxu0 %v2249
        %v2322 = vpop.f32.mrb[0].mxu0
        %v2323 = vadd.f32 0.0, %v2322
        %v2324 = vpop.f32.mrb[0].mxu0
        %2325 = vdwg.mxu0
        %v2327 = vsel %vm2156, %v2239, 0
        %v2330 = vsel %vm2156, %v2240, 0
        %2332 = vmatprep.subr.mxu0 0.0
        %2333 = vmatpush1.msra.mxu0 %v1714
        %2334 = vmatprep.subr.mxu0 0.0
        %2335 = vmatpush1.msra.mxu0 %v1782
        %2336 = vmatprep.subr.mxu0 0.0
        %2337 = vmatpush1.msra.mxu0 0.0
        %2338 = vmatprep.subr.mxu0 0.0
        %2339 = vmatpush1.msra.mxu0 0.0
        %2340 = vmatprep.subr.mxu0 0.0
        %2341 = vmatpush1.msra.mxu0 0.0
        %2342 = vmatprep.subr.mxu0 0.0
        %2343 = vmatpush1.msra.mxu0 0.0
        %2344 = vmatprep.subr.mxu0 0.0
        %2345 = vmatpush1.msra.mxu0 0.0
        %2346 = vmatprep.subr.mxu0 0.0
        %2347 = vmatpush1.msra.mxu0 0.0
        %2348 = vmatprep.subr.mxu0 0.0
        %2349 = vmatpush1.msra.mxu0 0.0
        %2350 = vmatprep.subr.mxu0 0.0
        %2351 = vmatpush1.msra.mxu0 0.0
        %2352 = vmatprep.subr.mxu0 0.0
        %2353 = vmatpush1.msra.mxu0 0.0
        %2354 = vmatprep.subr.mxu0 0.0
        %2355 = vmatpush1.msra.mxu0 0.0
        %2356 = vmatprep.subr.mxu0 0.0
        %2357 = vmatpush1.msra.mxu0 0.0
        %2358 = vmatprep.subr.mxu0 0.0
        %2359 = vmatpush1.msra.mxu0 0.0
        %2360 = vmatprep.subr.mxu0 0.0
        %2361 = vmatpush1.msra.mxu0 0.0
        %2362 = vmatprep.subr.mxu0 0.0
        %2363 = vmatpush1.msra.mxu0 0.0
        %2364 = vmatprep.subr.mxu0 0.0
        %2365 = vmatpush1.msra.mxu0 0.0
        %2366 = vmatprep.subr.mxu0 0.0
        %2367 = vmatpush1.msra.mxu0 0.0
        %2368 = vmatprep.subr.mxu0 0.0
        %2369 = vmatpush1.msra.mxu0 0.0
        %2370 = vmatprep.subr.mxu0 0.0
        %2371 = vmatpush1.msra.mxu0 0.0
        %2372 = vmatprep.subr.mxu0 0.0
        %2373 = vmatpush1.msra.mxu0 0.0
        %2374 = vmatprep.subr.mxu0 0.0
        %2375 = vmatpush1.msra.mxu0 0.0
        %2376 = vmatprep.subr.mxu0 0.0
        %2377 = vmatpush1.msra.mxu0 0.0
        %2378 = vmatprep.subr.mxu0 0.0
        %2379 = vmatpush1.msra.mxu0 0.0
        %2380 = vmatprep.subr.mxu0 0.0
        %2381 = vmatpush1.msra.mxu0 0.0
        %2382 = vmatprep.subr.mxu0 0.0
        %2383 = vmatpush1.msra.mxu0 0.0
        %2384 = vmatprep.subr.mxu0 0.0
        %2385 = vmatpush1.msra.mxu0 0.0
        %2386 = vmatprep.subr.mxu0 0.0
        %2387 = vmatpush1.msra.mxu0 0.0
        %2388 = vmatprep.subr.mxu0 0.0
        %2389 = vmatpush1.msra.mxu0 0.0
        %2390 = vmatprep.subr.mxu0 0.0
        %2391 = vmatpush1.msra.mxu0 0.0
        %2392 = vmatprep.subr.mxu0 0.0
        %2393 = vmatpush1.msra.mxu0 0.0
        %2394 = vmatprep.subr.mxu0 0.0
        %2395 = vmatpush1.msra.mxu0 0.0
        %2396 = vmatprep.mubr.f32.mxu0 0.0
        %2397 = vmatmul.mubr.f32.gmra.mrb[0].mxu0 %v2327
        %v2398 = vpop.f32.mrb[0].mxu0
        %v2399 = vadd.f32 0.0, %v2398
        %v2400 = vpop.f32.mrb[0].mxu0
        %2401 = vmatprep.mubr.f32.mxu0 0.0
        %2402 = vmatmul.mubr.f32.gmra.mrb[0].mxu0 %v2330
        %v2403 = vpop.f32.mrb[0].mxu0
        %v2404 = vadd.f32 0.0, %v2403
        %v2405 = vpop.f32.mrb[0].mxu0
        %2406 = vdwg.mxu0
        %v2408 = vsel %vm2156, %v2241, 0
        %v2411 = vsel %vm2156, %v2242, 0
        %2413 = vmatprep.subr.mxu0 0.0
        %2414 = vmatpush1.msra.mxu0 %v1715
        %2415 = vmatprep.subr.mxu0 0.0
        %2416 = vmatpush1.msra.mxu0 %v1783
        %2417 = vmatprep.subr.mxu0 0.0
        %2418 = vmatpush1.msra.mxu0 0.0
        %2419 = vmatprep.subr.mxu0 0.0
        %2420 = vmatpush1.msra.mxu0 0.0
        %2421 = vmatprep.subr.mxu0 0.0
        %2422 = vmatpush1.msra.mxu0 0.0
        %2423 = vmatprep.subr.mxu0 0.0
        %2424 = vmatpush1.msra.mxu0 0.0
        %2425 = vmatprep.subr.mxu0 0.0
        %2426 = vmatpush1.msra.mxu0 0.0
        %2427 = vmatprep.subr.mxu0 0.0
        %2428 = vmatpush1.msra.mxu0 0.0
        %2429 = vmatprep.subr.mxu0 0.0
        %2430 = vmatpush1.msra.mxu0 0.0
        %2431 = vmatprep.subr.mxu0 0.0
        %2432 = vmatpush1.msra.mxu0 0.0
        %2433 = vmatprep.subr.mxu0 0.0
        %2434 = vmatpush1.msra.mxu0 0.0
        %2435 = vmatprep.subr.mxu0 0.0
        %2436 = vmatpush1.msra.mxu0 0.0
        %2437 = vmatprep.subr.mxu0 0.0
        %2438 = vmatpush1.msra.mxu0 0.0
        %2439 = vmatprep.subr.mxu0 0.0
        %2440 = vmatpush1.msra.mxu0 0.0
        %2441 = vmatprep.subr.mxu0 0.0
        %2442 = vmatpush1.msra.mxu0 0.0
        %2443 = vmatprep.subr.mxu0 0.0
        %2444 = vmatpush1.msra.mxu0 0.0
        %2445 = vmatprep.subr.mxu0 0.0
        %2446 = vmatpush1.msra.mxu0 0.0
        %2447 = vmatprep.subr.mxu0 0.0
        %2448 = vmatpush1.msra.mxu0 0.0
        %2449 = vmatprep.subr.mxu0 0.0
        %2450 = vmatpush1.msra.mxu0 0.0
        %2451 = vmatprep.subr.mxu0 0.0
        %2452 = vmatpush1.msra.mxu0 0.0
        %2453 = vmatprep.subr.mxu0 0.0
        %2454 = vmatpush1.msra.mxu0 0.0
        %2455 = vmatprep.subr.mxu0 0.0
        %2456 = vmatpush1.msra.mxu0 0.0
        %2457 = vmatprep.subr.mxu0 0.0
        %2458 = vmatpush1.msra.mxu0 0.0
        %2459 = vmatprep.subr.mxu0 0.0
        %2460 = vmatpush1.msra.mxu0 0.0
        %2461 = vmatprep.subr.mxu0 0.0
        %2462 = vmatpush1.msra.mxu0 0.0
        %2463 = vmatprep.subr.mxu0 0.0
        %2464 = vmatpush1.msra.mxu0 0.0
        %2465 = vmatprep.subr.mxu0 0.0
        %2466 = vmatpush1.msra.mxu0 0.0
        %2467 = vmatprep.subr.mxu0 0.0
        %2468 = vmatpush1.msra.mxu0 0.0
        %2469 = vmatprep.subr.mxu0 0.0
        %2470 = vmatpush1.msra.mxu0 0.0
        %2471 = vmatprep.subr.mxu0 0.0
        %2472 = vmatpush1.msra.mxu0 0.0
        %2473 = vmatprep.subr.mxu0 0.0
        %2474 = vmatpush1.msra.mxu0 0.0
        %2475 = vmatprep.subr.mxu0 0.0
        %2476 = vmatpush1.msra.mxu0 0.0
        %2477 = vmatprep.mubr.f32.mxu0 0.0
        %2478 = vmatmul.mubr.f32.gmra.mrb[0].mxu0 %v2408
        %v2479 = vpop.f32.mrb[0].mxu0
        %v2480 = vadd.f32 0.0, %v2479
        %v2481 = vpop.f32.mrb[0].mxu0
        %2482 = vmatprep.mubr.f32.mxu0 0.0
        %2483 = vmatmul.mubr.f32.gmra.mrb[0].mxu0 %v2411
        %v2484 = vpop.f32.mrb[0].mxu0
        %v2485 = vadd.f32 0.0, %v2484
        %v2486 = vpop.f32.mrb[0].mxu0
        %2487 = vdwg.mxu0
        %v2489 = vsel %vm2156, %v2243, 0
        %v2492 = vsel %vm2156, %v2244, 0
        %2494 = vmatprep.subr.mxu0 0.0
        %2495 = vmatpush1.msra.mxu0 %v1716
        %2496 = vmatprep.subr.mxu0 0.0
        %2497 = vmatpush1.msra.mxu0 %v1784
        %2498 = vmatprep.subr.mxu0 0.0
        %2499 = vmatpush1.msra.mxu0 0.0
        %2500 = vmatprep.subr.mxu0 0.0
        %2501 = vmatpush1.msra.mxu0 0.0
        %2502 = vmatprep.subr.mxu0 0.0
        %2503 = vmatpush1.msra.mxu0 0.0
        %2504 = vmatprep.subr.mxu0 0.0
        %2505 = vmatpush1.msra.mxu0 0.0
        %2506 = vmatprep.subr.mxu0 0.0
        %2507 = vmatpush1.msra.mxu0 0.0
        %2508 = vmatprep.subr.mxu0 0.0
        %2509 = vmatpush1.msra.mxu0 0.0
        %2510 = vmatprep.subr.mxu0 0.0
        %2511 = vmatpush1.msra.mxu0 0.0
        %2512 = vmatprep.subr.mxu0 0.0
        %2513 = vmatpush1.msra.mxu0 0.0
        %2514 = vmatprep.subr.mxu0 0.0
        %2515 = vmatpush1.msra.mxu0 0.0
        %2516 = vmatprep.subr.mxu0 0.0
        %2517 = vmatpush1.msra.mxu0 0.0
        %2518 = vmatprep.subr.mxu0 0.0
        %2519 = vmatpush1.msra.mxu0 0.0
        %2520 = vmatprep.subr.mxu0 0.0
        %2521 = vmatpush1.msra.mxu0 0.0
        %2522 = vmatprep.subr.mxu0 0.0
        %2523 = vmatpush1.msra.mxu0 0.0
        %2524 = vmatprep.subr.mxu0 0.0
        %2525 = vmatpush1.msra.mxu0 0.0
        %2526 = vmatprep.subr.mxu0 0.0
        %2527 = vmatpush1.msra.mxu0 0.0
        %2528 = vmatprep.subr.mxu0 0.0
        %2529 = vmatpush1.msra.mxu0 0.0
        %2530 = vmatprep.subr.mxu0 0.0
        %2531 = vmatpush1.msra.mxu0 0.0
        %2532 = vmatprep.subr.mxu0 0.0
        %2533 = vmatpush1.msra.mxu0 0.0
        %2534 = vmatprep.subr.mxu0 0.0
        %2535 = vmatpush1.msra.mxu0 0.0
        %2536 = vmatprep.subr.mxu0 0.0
        %2537 = vmatpush1.msra.mxu0 0.0
        %2538 = vmatprep.subr.mxu0 0.0
        %2539 = vmatpush1.msra.mxu0 0.0
        %2540 = vmatprep.subr.mxu0 0.0
        %2541 = vmatpush1.msra.mxu0 0.0
        %2542 = vmatprep.subr.mxu0 0.0
        %2543 = vmatpush1.msra.mxu0 0.0
        %2544 = vmatprep.subr.mxu0 0.0
        %2545 = vmatpush1.msra.mxu0 0.0
        %2546 = vmatprep.subr.mxu0 0.0
        %2547 = vmatpush1.msra.mxu0 0.0
        %2548 = vmatprep.subr.mxu0 0.0
        %2549 = vmatpush1.msra.mxu0 0.0
        %2550 = vmatprep.subr.mxu0 0.0
        %2551 = vmatpush1.msra.mxu0 0.0
        %2552 = vmatprep.subr.mxu0 0.0
        %2553 = vmatpush1.msra.mxu0 0.0
        %2554 = vmatprep.subr.mxu0 0.0
        %2555 = vmatpush1.msra.mxu0 0.0
        %2556 = vmatprep.subr.mxu0 0.0
        %2557 = vmatpush1.msra.mxu0 0.0
        %2558 = vmatprep.mubr.f32.mxu0 0.0
        %2559 = vmatmul.mubr.f32.gmra.mrb[0].mxu0 %v2489
        %v2560 = vpop.f32.mrb[0].mxu0
        %v2561 = vadd.f32 0.0, %v2560
        %v2562 = vpop.f32.mrb[0].mxu0
        %2563 = vmatprep.mubr.f32.mxu0 0.0
        %2564 = vmatmul.mubr.f32.gmra.mrb[0].mxu0 %v2492
        %v2565 = vpop.f32.mrb[0].mxu0
        %v2566 = vadd.f32 0.0, %v2565
        %v2567 = vpop.f32.mrb[0].mxu0
        %2568 = vdwg.mxu0
        %v2569 = vcombine.low %v2318, %v2480
        %v2570 = vcombine.high %v2318, %v2480
        %v2572 = vunpack.c.l.s4 1983009808
        %v2573 = vunpack.c.0.s8 %v2572
        %v2574 = vlaneseq
        %v2575 = vshrl.u32 %v2574, 7
        %v2576 = vsub.s32 %v2573, %v2575
        %v2577 = vrot.slane %v2569, %v2576
        %v2579 = vunpack.c.l.s4 1983009808
        %v2580 = vunpack.c.0.s8 %v2579
        %v2581 = vlaneseq
        %v2582 = vshrl.u32 %v2581, 7
        %v2583 = vsub.s32 %v2580, %v2582
        %v2584 = vrot.slane %v2570, %v2583
        %v2585 = vcombine.low %v2399, %v2561
        %v2586 = vcombine.high %v2399, %v2561
        %v2588 = vunpack.c.l.s4 1983009808
        %v2589 = vunpack.c.0.s8 %v2588
        %v2590 = vlaneseq
        %v2591 = vshrl.u32 %v2590, 7
        %v2592 = vsub.s32 %v2589, %v2591
        %v2593 = vrot.slane %v2585, %v2592
        %v2595 = vunpack.c.l.s4 1983009808
        %v2596 = vunpack.c.0.s8 %v2595
        %v2597 = vlaneseq
        %v2598 = vshrl.u32 %v2597, 7
        %v2599 = vsub.s32 %v2596, %v2598
        %v2600 = vrot.slane %v2586, %v2599
        %v2601 = vcombine.low %v2577, %v2593
        %v2602 = vcombine.high %v2577, %v2593
        %v2604 = vunpack.c.l.s4 1934713408
        %v2605 = vunpack.c.0.s8 %v2604
        %v2606 = vlaneseq
        %v2607 = vshrl.u32 %v2606, 7
        %v2608 = vsub.s32 %v2605, %v2607
        %v2609 = vrot.slane %v2601, %v2608
        %v2611 = vunpack.c.l.s4 1934713408
        %v2612 = vunpack.c.0.s8 %v2611
        %v2613 = vlaneseq
        %v2614 = vshrl.u32 %v2613, 7
        %v2615 = vsub.s32 %v2612, %v2614
        %v2616 = vrot.slane %v2602, %v2615
        %v2617 = vcombine.low %v2584, %v2600
        %v2618 = vcombine.high %v2584, %v2600
        %v2620 = vunpack.c.l.s4 1934713408
        %v2621 = vunpack.c.0.s8 %v2620
        %v2622 = vlaneseq
        %v2623 = vshrl.u32 %v2622, 7
        %v2624 = vsub.s32 %v2621, %v2623
        %v2625 = vrot.slane %v2617, %v2624
        %v2627 = vunpack.c.l.s4 1934713408
        %v2628 = vunpack.c.0.s8 %v2627
        %v2629 = vlaneseq
        %v2630 = vshrl.u32 %v2629, 7
        %v2631 = vsub.s32 %v2628, %v2630
        %v2632 = vrot.slane %v2618, %v2631
        %v2633 = vcombine.high %v2609, 0.0
        %v2634 = vcombine.high %v2616, 0.0
        %v2635 = vcombine.high %v2625, 0.0
        %v2636 = vcombine.high %v2632, 0.0
        %v2637 = vcombine.low %v2323, %v2485
        %v2638 = vcombine.high %v2323, %v2485
        %v2640 = vunpack.c.l.s4 1983009808
        %v2641 = vunpack.c.0.s8 %v2640
        %v2642 = vlaneseq
        %v2643 = vshrl.u32 %v2642, 7
        %v2644 = vsub.s32 %v2641, %v2643
        %v2645 = vrot.slane %v2637, %v2644
        %v2647 = vunpack.c.l.s4 1983009808
        %v2648 = vunpack.c.0.s8 %v2647
        %v2649 = vlaneseq
        %v2650 = vshrl.u32 %v2649, 7
        %v2651 = vsub.s32 %v2648, %v2650
        %v2652 = vrot.slane %v2638, %v2651
        %v2653 = vcombine.low %v2404, %v2566
        %v2654 = vcombine.high %v2404, %v2566
        %v2656 = vunpack.c.l.s4 1983009808
        %v2657 = vunpack.c.0.s8 %v2656
        %v2658 = vlaneseq
        %v2659 = vshrl.u32 %v2658, 7
        %v2660 = vsub.s32 %v2657, %v2659
        %v2661 = vrot.slane %v2653, %v2660
        %v2663 = vunpack.c.l.s4 1983009808
        %v2664 = vunpack.c.0.s8 %v2663
        %v2665 = vlaneseq
        %v2666 = vshrl.u32 %v2665, 7
        %v2667 = vsub.s32 %v2664, %v2666
        %v2668 = vrot.slane %v2654, %v2667
        %v2669 = vcombine.low %v2645, %v2661
        %v2670 = vcombine.high %v2645, %v2661
        %v2672 = vunpack.c.l.s4 1934713408
        %v2673 = vunpack.c.0.s8 %v2672
        %v2674 = vlaneseq
        %v2675 = vshrl.u32 %v2674, 7
        %v2676 = vsub.s32 %v2673, %v2675
        %v2677 = vrot.slane %v2669, %v2676
        %v2679 = vunpack.c.l.s4 1934713408
        %v2680 = vunpack.c.0.s8 %v2679
        %v2681 = vlaneseq
        %v2682 = vshrl.u32 %v2681, 7
        %v2683 = vsub.s32 %v2680, %v2682
        %v2684 = vrot.slane %v2670, %v2683
        %v2685 = vcombine.low %v2652, %v2668
        %v2686 = vcombine.high %v2652, %v2668
        %v2688 = vunpack.c.l.s4 1934713408
        %v2689 = vunpack.c.0.s8 %v2688
        %v2690 = vlaneseq
        %v2691 = vshrl.u32 %v2690, 7
        %v2692 = vsub.s32 %v2689, %v2691
        %v2693 = vrot.slane %v2685, %v2692
        %v2695 = vunpack.c.l.s4 1934713408
        %v2696 = vunpack.c.0.s8 %v2695
        %v2697 = vlaneseq
        %v2698 = vshrl.u32 %v2697, 7
        %v2699 = vsub.s32 %v2696, %v2698
        %v2700 = vrot.slane %v2686, %v2699
        %v2701 = vcombine.high %v2677, 0.0
        %v2702 = vcombine.high %v2684, 0.0
        %v2703 = vcombine.high %v2693, 0.0
        %v2704 = vcombine.high %v2700, 0.0
        %v2705 = vcombine.low %v2609, %v2616
        %v2707 = vunpack.c.l.s4 1983009808
        %v2708 = vunpack.c.0.s8 %v2707
        %v2709 = vlaneseq
        %v2710 = vshrl.u32 %v2709, 7
        %v2711 = vsub.s32 %v2708, %v2710
        %v2712 = vrot.slane %v2705, %v2711
        %v2713 = vcombine.low %v2633, %v2634
        %v2715 = vunpack.c.l.s4 1983009808
        %v2716 = vunpack.c.0.s8 %v2715
        %v2717 = vlaneseq
        %v2718 = vshrl.u32 %v2717, 7
        %v2719 = vsub.s32 %v2716, %v2718
        %v2720 = vrot.slane %v2713, %v2719
        %v2721 = vcombine.low %v2625, %v2632
        %v2723 = vunpack.c.l.s4 1983009808
        %v2724 = vunpack.c.0.s8 %v2723
        %v2725 = vlaneseq
        %v2726 = vshrl.u32 %v2725, 7
        %v2727 = vsub.s32 %v2724, %v2726
        %v2728 = vrot.slane %v2721, %v2727
        %v2729 = vcombine.low %v2635, %v2636
        %v2731 = vunpack.c.l.s4 1983009808
        %v2732 = vunpack.c.0.s8 %v2731
        %v2733 = vlaneseq
        %v2734 = vshrl.u32 %v2733, 7
        %v2735 = vsub.s32 %v2732, %v2734
        %v2736 = vrot.slane %v2729, %v2735
        %v2737 = vcombine.low %v2712, %v2720
        %v2738 = vcombine.high %v2712, %v2720
        %v2740 = vunpack.c.l.s4 1934713408
        %v2741 = vunpack.c.0.s8 %v2740
        %v2742 = vlaneseq
        %v2743 = vshrl.u32 %v2742, 7
        %v2744 = vsub.s32 %v2741, %v2743
        %v2745 = vrot.slane %v2737, %v2744
        %v2747 = vunpack.c.l.s4 1934713408
        %v2748 = vunpack.c.0.s8 %v2747
        %v2749 = vlaneseq
        %v2750 = vshrl.u32 %v2749, 7
        %v2751 = vsub.s32 %v2748, %v2750
        %v2752 = vrot.slane %v2738, %v2751
        %v2753 = vcombine.low %v2728, %v2736
        %v2754 = vcombine.high %v2728, %v2736
        %v2756 = vunpack.c.l.s4 1934713408
        %v2757 = vunpack.c.0.s8 %v2756
        %v2758 = vlaneseq
        %v2759 = vshrl.u32 %v2758, 7
        %v2760 = vsub.s32 %v2757, %v2759
        %v2761 = vrot.slane %v2753, %v2760
        %v2763 = vunpack.c.l.s4 1934713408
        %v2764 = vunpack.c.0.s8 %v2763
        %v2765 = vlaneseq
        %v2766 = vshrl.u32 %v2765, 7
        %v2767 = vsub.s32 %v2764, %v2766
        %v2768 = vrot.slane %v2754, %v2767
        %v2769 = vcombine.low %v2745, %v2761
        %v2770 = vcombine.high %v2745, %v2761
        %v2771 = vcombine.low %v2752, %v2768
        %v2772 = vcombine.high %v2752, %v2768
        %v2773 = vcombine.low %v2677, %v2684
        %v2775 = vunpack.c.l.s4 1983009808
        %v2776 = vunpack.c.0.s8 %v2775
        %v2777 = vlaneseq
        %v2778 = vshrl.u32 %v2777, 7
        %v2779 = vsub.s32 %v2776, %v2778
        %v2780 = vrot.slane %v2773, %v2779
        %v2781 = vcombine.low %v2701, %v2702
        %v2783 = vunpack.c.l.s4 1983009808
        %v2784 = vunpack.c.0.s8 %v2783
        %v2785 = vlaneseq
        %v2786 = vshrl.u32 %v2785, 7
        %v2787 = vsub.s32 %v2784, %v2786
        %v2788 = vrot.slane %v2781, %v2787
        %v2789 = vcombine.low %v2693, %v2700
        %v2791 = vunpack.c.l.s4 1983009808
        %v2792 = vunpack.c.0.s8 %v2791
        %v2793 = vlaneseq
        %v2794 = vshrl.u32 %v2793, 7
        %v2795 = vsub.s32 %v2792, %v2794
        %v2796 = vrot.slane %v2789, %v2795
        %v2797 = vcombine.low %v2703, %v2704
        %v2799 = vunpack.c.l.s4 1983009808
        %v2800 = vunpack.c.0.s8 %v2799
        %v2801 = vlaneseq
        %v2802 = vshrl.u32 %v2801, 7
        %v2803 = vsub.s32 %v2800, %v2802
        %v2804 = vrot.slane %v2797, %v2803
        %v2805 = vcombine.low %v2780, %v2788
        %v2806 = vcombine.high %v2780, %v2788
        %v2808 = vunpack.c.l.s4 1934713408
        %v2809 = vunpack.c.0.s8 %v2808
        %v2810 = vlaneseq
        %v2811 = vshrl.u32 %v2810, 7
        %v2812 = vsub.s32 %v2809, %v2811
        %v2813 = vrot.slane %v2805, %v2812
        %v2815 = vunpack.c.l.s4 1934713408
        %v2816 = vunpack.c.0.s8 %v2815
        %v2817 = vlaneseq
        %v2818 = vshrl.u32 %v2817, 7
        %v2819 = vsub.s32 %v2816, %v2818
        %v2820 = vrot.slane %v2806, %v2819
        %v2821 = vcombine.low %v2796, %v2804
        %v2822 = vcombine.high %v2796, %v2804
        %v2824 = vunpack.c.l.s4 1934713408
        %v2825 = vunpack.c.0.s8 %v2824
        %v2826 = vlaneseq
        %v2827 = vshrl.u32 %v2826, 7
        %v2828 = vsub.s32 %v2825, %v2827
        %v2829 = vrot.slane %v2821, %v2828
        %v2831 = vunpack.c.l.s4 1934713408
        %v2832 = vunpack.c.0.s8 %v2831
        %v2833 = vlaneseq
        %v2834 = vshrl.u32 %v2833, 7
        %v2835 = vsub.s32 %v2832, %v2834
        %v2836 = vrot.slane %v2822, %v2835
        %v2837 = vcombine.low %v2813, %v2829
        %v2838 = vcombine.high %v2813, %v2829
        %v2839 = vcombine.low %v2820, %v2836
        %v2840 = vcombine.high %v2820, %v2836
        %2843 = vrot.lane.b32.xlu0 %v2770, 32
        %v2844 = vpop.permute.xlu0 %2843
        %2845 = vrot.lane.b32.xlu0 %v2838, 32
        %v2846 = vpop.permute.xlu0 %2845
        %2851 = vrot.lane.b32.xlu0 %v2771, 64
        %v2852 = vpop.permute.xlu0 %2851
        %2853 = vrot.lane.b32.xlu0 %v2839, 64
        %v2854 = vpop.permute.xlu0 %2853
        %2859 = vrot.lane.b32.xlu0 %v2772, 96
        %v2860 = vpop.permute.xlu0 %2859
        %2861 = vrot.lane.b32.xlu0 %v2840, 96
        %v2862 = vpop.permute.xlu0 %2861
        %v2865 = vsel %vm1785, %v2769, %v2844
        %v2866 = vsel %vm1785, %v2837, %v2846
        %vm2867 = vcmask 523264
        %v2868 = vsel %vm2867, %v2865, %v2852
        %v2869 = vsel %vm2867, %v2866, %v2854
        %vm2870 = vcmask 785408
        %v2871 = vsel %vm2870, %v2868, %v2860
        %v2872 = vsel %vm2870, %v2869, %v2862
        %v2873 = vld [vmem:[#allocation14] sm:$0xff]
        %v2874 = vld [vmem:[#allocation14 + $0x8] sm:$0xff]
        %v2875 = vld [vmem:[#allocation14 + $0x10] sm:$0xff]
        %v2876 = vld [vmem:[#allocation14 + $0x18] sm:$0xff]
        %v2877 = vld [vmem:[#allocation14 + $0x20] sm:$0xff]
        %v2878 = vld [vmem:[#allocation14 + $0x28] sm:$0xff]
        %v2879 = vld [vmem:[#allocation14 + $0x30] sm:$0xff]
        %v2880 = vld [vmem:[#allocation14 + $0x38] sm:$0xff]
        %v2881 = vld [vmem:[#allocation14 + $0x40] sm:$0xff]
        %v2882 = vld [vmem:[#allocation14 + $0x48] sm:$0xff]
        %v2883 = vld [vmem:[#allocation14 + $0x50] sm:$0xff]
        %v2884 = vld [vmem:[#allocation14 + $0x58] sm:$0xff]
        %v2885 = vld [vmem:[#allocation14 + $0x60] sm:$0xff]
        %v2886 = vld [vmem:[#allocation14 + $0x68] sm:$0xff]
        %v2887 = vld [vmem:[#allocation14 + $0x70] sm:$0xff]
        %v2888 = vld [vmem:[#allocation14 + $0x78] sm:$0xff]
        %v2889 = vld [vmem:[%s11] sm:$0x1]
        %v2891 = vlaneseq
        %v2892 = vshrl.u32 %v2891, 7
        %v2893 = vsub.s32 0, %v2892
        %v2894 = vrot.slane %v2889, %v2893
        %2896 = vmatprep.subr.mxu0 0.0
        %2897 = vmatpush1.msra.mxu0 %v2873
        %2898 = vmatprep.subr.mxu0 0.0
        %2899 = vmatpush1.msra.mxu0 %v2874
        %2900 = vmatprep.subr.mxu0 0.0
        %2901 = vmatpush1.msra.mxu0 %v2875
        %2902 = vmatprep.subr.mxu0 0.0
        %2903 = vmatpush1.msra.mxu0 %v2876
        %2904 = vmatprep.subr.mxu0 0.0
        %2905 = vmatpush1.msra.mxu0 %v2877
        %2906 = vmatprep.subr.mxu0 0.0
        %2907 = vmatpush1.msra.mxu0 %v2878
        %2908 = vmatprep.subr.mxu0 0.0
        %2909 = vmatpush1.msra.mxu0 %v2879
        %2910 = vmatprep.subr.mxu0 0.0
        %2911 = vmatpush1.msra.mxu0 %v2880
        %2912 = vmatprep.subr.mxu0 0.0
        %2913 = vmatpush1.msra.mxu0 %v2881
        %2914 = vmatprep.subr.mxu0 0.0
        %2915 = vmatpush1.msra.mxu0 %v2882
        %2916 = vmatprep.subr.mxu0 0.0
        %2917 = vmatpush1.msra.mxu0 %v2883
        %2918 = vmatprep.subr.mxu0 0.0
        %2919 = vmatpush1.msra.mxu0 %v2884
        %2920 = vmatprep.subr.mxu0 0.0
        %2921 = vmatpush1.msra.mxu0 %v2885
        %2922 = vmatprep.subr.mxu0 0.0
        %2923 = vmatpush1.msra.mxu0 %v2886
        %2924 = vmatprep.subr.mxu0 0.0
        %2925 = vmatpush1.msra.mxu0 %v2887
        %2926 = vmatprep.subr.mxu0 0.0
        %2927 = vmatpush1.msra.mxu0 %v2888
        %2928 = vmatprep.subr.mxu0 0.0
        %2929 = vmatpush1.msra.mxu0 0.0
        %2930 = vmatprep.subr.mxu0 0.0
        %2931 = vmatpush1.msra.mxu0 0.0
        %2932 = vmatprep.subr.mxu0 0.0
        %2933 = vmatpush1.msra.mxu0 0.0
        %2934 = vmatprep.subr.mxu0 0.0
        %2935 = vmatpush1.msra.mxu0 0.0
        %2936 = vmatprep.subr.mxu0 0.0
        %2937 = vmatpush1.msra.mxu0 0.0
        %2938 = vmatprep.subr.mxu0 0.0
        %2939 = vmatpush1.msra.mxu0 0.0
        %2940 = vmatprep.subr.mxu0 0.0
        %2941 = vmatpush1.msra.mxu0 0.0
        %2942 = vmatprep.subr.mxu0 0.0
        %2943 = vmatpush1.msra.mxu0 0.0
        %2944 = vmatprep.subr.mxu0 0.0
        %2945 = vmatpush1.msra.mxu0 0.0
        %2946 = vmatprep.subr.mxu0 0.0
        %2947 = vmatpush1.msra.mxu0 0.0
        %2948 = vmatprep.subr.mxu0 0.0
        %2949 = vmatpush1.msra.mxu0 0.0
        %2950 = vmatprep.subr.mxu0 0.0
        %2951 = vmatpush1.msra.mxu0 0.0
        %2952 = vmatprep.subr.mxu0 0.0
        %2953 = vmatpush1.msra.mxu0 0.0
        %2954 = vmatprep.subr.mxu0 0.0
        %2955 = vmatpush1.msra.mxu0 0.0
        %2956 = vmatprep.subr.mxu0 0.0
        %2957 = vmatpush1.msra.mxu0 0.0
        %2958 = vmatprep.subr.mxu0 0.0
        %2959 = vmatpush1.msra.mxu0 0.0
        %2960 = vmatprep.mubr.f32.mxu0 0.0
        %2961 = vmatmul.mubr.f32.gmra.mrb[0].mxu0 %v2871
        %v2962 = vpop.f32.mrb[0].mxu0
        %v2963 = vadd.f32 %v2894, %v2962
        %v2964 = vpop.f32.mrb[0].mxu0
        %2965 = vmatprep.mubr.f32.mxu0 0.0
        %2966 = vmatmul.mubr.f32.gmra.mrb[0].mxu0 %v2872
        %v2967 = vpop.f32.mrb[0].mxu0
        %v2968 = vadd.f32 %v2894, %v2967
        %v2969 = vpop.f32.mrb[0].mxu0
        %2970 = vdwg.mxu0
        %2971 = vst [vmem:[%s606] sm:$0xff] %v2963
        %2972 = vst [vmem:[%s606 + $0x8] sm:$0xff] %v2968
        %s2973 = sand.u32 %s317, 1
        %s2974 = scalar_lea.sflag [#allocation4], %s2973
        %s2975 = sand.u32 %s317, 1
        %s2976 = smul.addr %s2975, 16
        %s2977 = scalar_lea.vmem [#allocation16], %s2976
        // Predicated region
        $region101: #{multi_head_attention.1} parent=67 // pred_check
          %p2978 = pneg %p327
        $region102: #{multi_head_attention.1} parent=67 // pred_check_branch
          %2980 = sbr.rel (%p2978) target = $region104
        $region103: #{multi_head_attention.1} parent=67 // pred_region
          %s2982 = ssub.s32 256, 256
          %2983 = vsyncadd %s2974, %s2982
          %s2984 = smul.addr %s37, 2
          %s2985 = smul.addr %s2984, 128
          %s2986 = scalar_lea.hbm %s12, %s2985
          %s2987 = sshll.u32 %s2977, 4
          %s2988 = int_to_ptr.vmem [resolvable:$true] %s2987
          %2993 = dma.vmem_to_hbm [thread:$0]  %s2988, 256, %s2986, %s2974, 128, 128, 8
        $region104: #{multi_head_attention.1} parent=67 // pred_fallthru
          _
      $region68: #{multi_head_attention.1} parent=5 // pred_fallthru
        _
      %p2994 = scmp.le.s32.totalorder 2, %s32
      // Predicated region
      $region105: #{multi_head_attention.1} parent=5 // pred_check
        %p2995 = pneg %p2994
      $region106: #{multi_head_attention.1} parent=5 // pred_check_branch
        %2997 = sbr.rel (%p2995) target = $region108
      $region107: #{multi_head_attention.1} parent=5 // pred_region
        %s2998 = ssub.s32 %s32, 2
        // Predicated region
        $region109: #{multi_head_attention.1} parent=107 // pred_check
          %p2999 = pneg %p333
        $region110: #{multi_head_attention.1} parent=107 // pred_check_branch
          %3001 = sbr.rel (%p2999) target = $region112
        $region111: #{multi_head_attention.1} parent=107 // pred_region
          %s3002 = sand.u32 %s318, 1
          %s3003 = scalar_lea.sflag [#allocation4], %s3002
          %s3004 = sand.u32 %s318, 1
          %s3005 = smul.addr %s3004, 16
          %s3006 = scalar_lea.vmem [#allocation16], %s3005
          %3007 = dma.done %s3003, 256
        $region112: #{multi_head_attention.1} parent=107 // pred_fallthru
          _
      $region108: #{multi_head_attention.1} parent=5 // pred_fallthru
        _
    $region6: #{multi_head_attention.1} parent=1 // loop_footer
      %s36 = sadd.s32 1, %s32
    $region7: #{multi_head_attention.1} parent=1 // loop_footer_branch
      %31 = sbr.rel target = $region3
    $region8: #{multi_head_attention.1} parent=1 // loop_exit
      _
    %3008 = vsyncpa [#allocation3], 1
    %s3009 = scalar_lea.sflag [#allocation3], 1
    %3010 = vsyncpa %s3009, 1
    %3011 = vsyncpa [#allocation6], 1
    %s3012 = scalar_lea.sflag [#allocation6], 1
    %3013 = vsyncpa %s3012, 1
    %3014 = vsyncpa [#allocation9], 1
    %s3015 = scalar_lea.sflag [#allocation9], 1
    %3016 = vsyncpa %s3015, 1
    %3017 = vsyncpa [#allocation12], 1
    %3018 = vsyncpa [#allocation15], 1
    %3019 = vsyncpa [#allocation4], 1
    %s3020 = scalar_lea.sflag [#allocation4], 1
    %3021 = vsyncpa %s3020, 1

</llo_original>
